<compile_context>
chip_gen: v5e
topology: v5e:2x2
jax: 0.10.0
libtpu: 0.0.40
codegen_flags: <defaults>
</compile_context>

<pallas_src>
import functools
import math

import jax
import jax.numpy as jnp
from jax import lax
from jax.experimental import pallas as pl
from jax.experimental.pallas import tpu as pltpu


# Layer order: enc1, enc2, enc3, dec1, dec2, dec3  (heads = [4,1,1, 4,1,1])
_HEADS = (4, 1, 1, 4, 1, 1)
_ACTIVE = (True, True, False, True, True, True)
_LANE = 128


# ---------------------------------------------------------------------------
# In-kernel GNNLayer math (operates on VMEM-resident values).
# ---------------------------------------------------------------------------
def _gnn_layer_body(seq, adj_f32, adj_mxu, w12, *, n_head, f_out, active, mxu_dtype):
    """One GNNLayer forward (eval mode).

    seq     : (N, F_in)  f32
    adj_f32 : (N, N)     f32        (elementwise mask + exact normalization values)
    adj_mxu : (N, N)     mxu_dtype  (same values, pre-cast once for the MXU)
    w12     : (F_in, 2*H*f_out) mxu_dtype; layout [w1 heads | w2 heads] along lanes,
              already transposed from torch's (out, in).
    """
    hw = n_head * f_out
    # Single fused lane-dense matmul + one tanh covering both weight sets of all heads.
    fts_all = jnp.tanh(
        jnp.dot(seq.astype(mxu_dtype), w12, preferred_element_type=jnp.float32))
    fts1_all = fts_all[:, :hw]
    # Hoisted logits scale: (f2 @ f1.T) / sqrt(f_out) == (f2 * scale) @ f1.T
    fts2_all = fts_all[:, hw:] * jnp.float32(1.0 / math.sqrt(f_out))
    # Hoisted second tanh (active branch): one EUP pass over the lane-dense slab.
    fts1_agg_all = jnp.tanh(fts1_all) if active else fts1_all

    agg = None
    for h in range(n_head):  # static unroll, n_head <= 4
        sl = slice(h * f_out, (h + 1) * f_out)
        f1 = fts1_all[:, sl]
        f2s = fts2_all[:, sl]
        # logits = f2s @ f1.T (contract last dims; no explicit transpose materialized).
        logits = lax.dot_general(
            f2s.astype(mxu_dtype), f1.astype(mxu_dtype),
            (((1,), (1,)), ((), ())), preferred_element_type=jnp.float32)
        coefs = jnp.exp(logits) * adj_f32
        # torch quirk (no keepdims): coefs[i, j] /= sum_k coefs[j, k].
        # Mathematically identical but cheaper: fold the per-column reciprocal into
        # the rows of the value matrix:  (coefs * inv[None,:]) @ f1 == coefs @ (f1 * inv).
        # NOTE: no epsilon guard, exactly like torch (all-zero adjacency row -> inf/nan).
        inv = pl.reciprocal(jnp.sum(coefs, axis=-1, keepdims=True), approx=False)
        f1v = fts1_agg_all[:, sl] * inv
        contrib = jnp.dot(coefs.astype(mxu_dtype), f1v.astype(mxu_dtype),
                          preferred_element_type=jnp.float32)
        agg = contrib if agg is None else agg + contrib

    # sum_h adj @ ret_h / H  ==  adj @ (sum_h ret_h) * (1/H)
    return jnp.dot(adj_mxu, agg.astype(mxu_dtype),
                   preferred_element_type=jnp.float32) * jnp.float32(1.0 / n_head)


def _inner_product_sigmoid(z, mxu_dtype):
    # sigmoid(z @ z.T) without materializing z.T; f32 accumulation, f32 sigmoid.
    zc = z.astype(mxu_dtype)
    return jax.nn.sigmoid(
        lax.dot_general(zc, zc, (((1,), (1,)), ((), ())),
                        preferred_element_type=jnp.float32))


# ---------------------------------------------------------------------------
# Fused IGAE forward kernel: all 6 layers, both sigmoid decoders, and the final
# adjacency add in one kernel invocation (all intermediates stay in VMEM).
# ---------------------------------------------------------------------------
def _igae_kernel(*refs, heads, actives, mxu_dtype, slab_width):
    n_layers = len(heads)
    x_ref, adj_ref = refs[0], refs[1]
    w_refs = refs[2:2 + n_layers]
    z_slab_ref, adj_hat_ref = refs[2 + n_layers:]

    x = x_ref[...].astype(jnp.float32)
    adj = adj_ref[...].astype(jnp.float32)
    adj_mxu = adj.astype(mxu_dtype)   # cast once, reused by every layer

    def layer(seq, idx):
        w12 = w_refs[idx][...]
        n_head = heads[idx]
        f_out = w12.shape[1] // (2 * n_head)
        return _gnn_layer_body(seq, adj, adj_mxu, w12, n_head=n_head,
                               f_out=f_out, active=actives[idx],
                               mxu_dtype=mxu_dtype)

    # --- encoder ---
    z = layer(x, 0)
    z = layer(z, 1)
    z_igae = layer(z, 2)
    # Accumulate adj_hat directly into its output ref (z_igae_adj not kept live
    # across the decoder half -> lower peak VMEM).
    adj_hat_ref[...] = _inner_product_sigmoid(z_igae, mxu_dtype).astype(adj_hat_ref.dtype)

    # --- decoder ---
    z = layer(z_igae, 3)
    z = layer(z, 4)
    z_hat = layer(z, 5)
    adj_hat_ref[...] = (adj_hat_ref[...] +
                        _inner_product_sigmoid(z_hat, mxu_dtype)).astype(adj_hat_ref.dtype)

    # Lane-dense packed latent output: [z_igae | z_hat | 0-pad] -> one unmasked store.
    n_rows = z_igae.shape[0]
    pad = slab_width - (z_igae.shape[1] + z_hat.shape[1])
    pieces = [z_igae, z_hat]
    if pad > 0:
        pieces.append(jnp.zeros((n_rows, pad), jnp.float32))
    z_slab_ref[...] = jnp.concatenate(pieces, axis=-1).astype(z_slab_ref.dtype)


def igae_forward(params, x, adj, *, mxu_dtype=jnp.bfloat16):
    """params: list of 6 (w1_cat, w2_cat) tuples, each (F_in, H*F_out) f32.
    Returns (z_igae, z_hat, adj_hat), matching torch IGAE.forward (eval mode)."""
    N, _ = x.shape
    enc3_out = params[2][0].shape[1] // _HEADS[2]
    dec3_out = params[5][0].shape[1] // _HEADS[5]   # == n_input
    slab_width = -(-(enc3_out + dec3_out) // _LANE) * _LANE

    # Fuse w1/w2 along the lane dim and pre-cast to the MXU input dtype in the wrapper.
    w12 = [jnp.concatenate([w1, w2], axis=1).astype(mxu_dtype) for (w1, w2) in params]

    inputs = (x.astype(jnp.float32), adj.astype(jnp.float32), *w12)
    out_shapes = (
        jax.ShapeDtypeStruct((N, slab_width), jnp.float32),   # [z_igae | z_hat | pad]
        jax.ShapeDtypeStruct((N, N), jnp.float32),            # adj_hat
    )

    # Explicit VMEM budget: IO (double-buffered by pallas) + a handful of (N,N) f32
    # temporaries (logits / coefs / exp / partial sums) + slack, clamped to sane bounds.
    in_bytes = sum(int(a.size) * a.dtype.itemsize for a in inputs)
    out_bytes = sum(int(s.size) * jnp.dtype(s.dtype).itemsize for s in out_shapes)
    vmem_limit = int(min(100 * 2**20,
                         max(32 * 2**20,
                             2 * (in_bytes + out_bytes) + 16 * N * N * 4 + (1 << 20))))

    vmem = lambda: pl.BlockSpec(memory_space=pltpu.MemorySpace.VMEM)
    kernel = functools.partial(_igae_kernel, heads=_HEADS, actives=_ACTIVE,
                               mxu_dtype=mxu_dtype, slab_width=slab_width)

    z_slab, adj_hat = pl.pallas_call(
        kernel,
        out_shape=out_shapes,
        in_specs=[vmem() for _ in range(len(inputs))],
        out_specs=(vmem(), vmem()),
        compiler_params=pltpu.CompilerParams(vmem_limit_bytes=vmem_limit),
    )(*inputs)

    z_igae = z_slab[:, :enc3_out]
    z_hat = z_slab[:, enc3_out:enc3_out + dec3_out]
    return z_igae, z_hat, adj_hat


# ---------------------------------------------------------------------------
# Parameter construction (xavier_uniform, deterministic). Weights are produced
# in torch layout (F_out, F_in) per head, then pre-transposed + head-concatenated
# to (F_in, H*F_out) so the kernel consumes them directly.
# ---------------------------------------------------------------------------
def _xavier_uniform(key, f_out, f_in):
    bound = math.sqrt(6.0 / (f_in + f_out))
    return jax.random.uniform(key, (f_out, f_in), jnp.float32, -bound, bound)


def _make_layer_params(key, f_in, f_out, n_head):
    k1, k2 = jax.random.split(key)
    w1 = jnp.stack([_xavier_uniform(k, f_out, f_in)
                    for k in jax.random.split(k1, n_head)])  # (H, F_out, F_in)
    w2 = jnp.stack([_xavier_uniform(k, f_out, f_in)
                    for k in jax.random.split(k2, n_head)])

    def cat(w):  # (H, F_out, F_in) -> (F_in, H*F_out)
        return jnp.transpose(w, (2, 0, 1)).reshape(f_in, n_head * f_out)

    return cat(w1), cat(w2)


def init_igae_params(key, n_input, enc1, enc2, enc3, dec1, dec2, dec3):
    keys = jax.random.split(key, 6)
    dims = [(n_input, enc1), (enc1, enc2), (enc2, enc3),
            (dec1, dec2), (dec2, dec3), (dec3, n_input)]
    return [_make_layer_params(k, fi, fo, h)
            for k, (fi, fo), h in zip(keys, dims, _HEADS)]


# ---------------------------------------------------------------------------
# Pure-JAX reference (faithful per-head translation of the torch module,
# eval-mode dropout = identity) for correctness checking.
# ---------------------------------------------------------------------------
def _ref_gnn_layer(seq, adj, w1_cat, w2_cat, n_head, active):
    f_out = w1_cat.shape[1] // n_head
    out = jnp.zeros((seq.shape[0], f_out), jnp.float32)
    for h in range(n_head):
        w1 = w1_cat[:, h * f_out:(h + 1) * f_out]
        w2 = w2_cat[:, h * f_out:(h + 1) * f_out]
        f1 = jnp.tanh(seq @ w1)
        f2 = jnp.tanh(seq @ w2)
        logits = (f2 @ f1.T) / jnp.sqrt(jnp.float32(f_out))
        coefs = jnp.exp(logits) * adj
        coefs = coefs / jnp.sum(coefs, axis=-1)[None, :]   # torch broadcast quirk
        if active:
            f1 = jnp.tanh(f1)
        ret = adj @ (coefs @ f1)
        out = out + ret / n_head
    return out


def _ref_forward(params, x, adj):
    z = x
    for i in range(3):
        z = _ref_gnn_layer(z, adj, params[i][0], params[i][1], _HEADS[i], _ACTIVE[i])
    z_igae = z
    z_igae_adj = jax.nn.sigmoid(z_igae @ z_igae.T)
    z = z_igae
    for i in range(3, 6):
        z = _ref_gnn_layer(z, adj, params[i][0], params[i][1], _HEADS[i], _ACTIVE[i])
    z_hat = z
    z_hat_adj = jax.nn.sigmoid(z_hat @ z_hat.T)
    return z_igae, z_hat, z_igae_adj + z_hat_adj


if __name__ == "__main__":
    # Small, consistent shapes: N=16 graph nodes, n_input=16 features.
    N = 16
    n_input = 16
    enc1, enc2, enc3 = 32, 16, 8
    dec1, dec2, dec3 = 8, 16, 32  # dec1 == enc3 (latent dim)

    key = jax.random.PRNGKey(0)
    k_x, k_adj, k_par = jax.random.split(key, 3)

    x = jax.random.normal(k_x, (N, n_input), jnp.float32)

    # Symmetric adjacency with self-loops, row-normalized (positive row sums).
    a = (jax.random.uniform(k_adj, (N, N)) < 0.3).astype(jnp.float32)
    a = jnp.maximum(a, a.T) + jnp.eye(N, dtype=jnp.float32)
    adj = a / jnp.sum(a, axis=-1, keepdims=True)

    params = init_igae_params(k_par, n_input, enc1, enc2, enc3, dec1, dec2, dec3)
    r_igae, r_hat, r_adj = _ref_forward(params, x, adj)

    # 1) f32 MXU-input path: tight check against the torch-faithful reference
    #    (only op-reordering / reassociation differences).
    z_igae, z_hat, adj_hat = igae_forward(params, x, adj, mxu_dtype=jnp.float32)
    jax.block_until_ready((z_igae, z_hat, adj_hat))
    assert z_igae.shape == (N, enc3)
    assert z_hat.shape == (N, n_input)
    assert adj_hat.shape == (N, N)
    assert bool(jnp.all(jnp.isfinite(z_igae)))
    assert bool(jnp.all(jnp.isfinite(z_hat)))
    assert bool(jnp.all(jnp.isfinite(adj_hat)))
    assert bool(jnp.allclose(z_igae, r_igae, rtol=2e-2, atol=2e-2))
    assert bool(jnp.allclose(z_hat, r_hat, rtol=2e-2, atol=2e-2))
    assert bool(jnp.allclose(adj_hat, r_adj, rtol=2e-2, atol=2e-2))

    # 2) bf16 MXU-input path (default / MXU-native on v5e/v6e/v7x): looser tolerance
    #    absorbs bf16 operand rounding; elementwise math stays f32.
    zb_igae, zb_hat, adjb_hat = igae_forward(params, x, adj, mxu_dtype=jnp.bfloat16)
    jax.block_until_ready((zb_igae, zb_hat, adjb_hat))
    assert bool(jnp.all(jnp.isfinite(zb_igae)))
    assert bool(jnp.all(jnp.isfinite(zb_hat)))
    assert bool(jnp.all(jnp.isfinite(adjb_hat)))
    assert bool(jnp.allclose(zb_igae, r_igae, rtol=1e-1, atol=1e-1))
    assert bool(jnp.allclose(zb_hat, r_hat, rtol=1e-1, atol=1e-1))
    assert bool(jnp.allclose(adjb_hat, r_adj, rtol=1e-1, atol=1e-1))

    print("KERNEL_OK")
</pallas_src>

<mosaic_0001>
module attributes {stable_mosaic.version = 11 : i64} {
  func.func @_igae_kernel(%arg0: memref<16x16xf32, #tpu.memory_space<vmem>>, %arg1: memref<16x16xf32, #tpu.memory_space<vmem>>, %arg2: memref<16x256xf32, #tpu.memory_space<vmem>>, %arg3: memref<32x32xf32, #tpu.memory_space<vmem>>, %arg4: memref<16x16xf32, #tpu.memory_space<vmem>>, %arg5: memref<8x128xf32, #tpu.memory_space<vmem>>, %arg6: memref<16x64xf32, #tpu.memory_space<vmem>>, %arg7: memref<32x32xf32, #tpu.memory_space<vmem>>, %arg8: memref<16x128xf32, #tpu.memory_space<vmem>>, %arg9: memref<16x16xf32, #tpu.memory_space<vmem>>) attributes {dimension_semantics = [], scalar_prefetch = 0 : i64, scratch_operands = 0 : i64, tpu.core_type = #tpu.core_type<tc>} {
    %c0 = arith.constant 0 : index
    %c0_0 = arith.constant 0 : index
    %0 = vector.load %arg0[%c0, %c0_0] : memref<16x16xf32, #tpu.memory_space<vmem>>, vector<16x16xf32>
    %c0_1 = arith.constant 0 : index
    %c0_2 = arith.constant 0 : index
    %1 = vector.load %arg1[%c0_1, %c0_2] : memref<16x16xf32, #tpu.memory_space<vmem>>, vector<16x16xf32>
    %c0_3 = arith.constant 0 : index
    %c0_4 = arith.constant 0 : index
    %2 = vector.load %arg2[%c0_3, %c0_4] : memref<16x256xf32, #tpu.memory_space<vmem>>, vector<16x256xf32>
    %cst = arith.constant dense<0.000000e+00> : vector<16x256xf32>
    %3 = tpu.matmul %0, %2, %cst {dimension_numbers = #tpu.dot_dimension_numbers<[1], [0], [0], [1], [0, 0, 1, 1], [], []>} : vector<16x16xf32>, vector<16x256xf32>, vector<16x256xf32> -> vector<16x256xf32>
    %4 = math.tanh %3 : vector<16x256xf32>
    %5 = vector.extract_strided_slice %4 {offsets = [0, 0], sizes = [16, 128], strides = [1, 1]} : vector<16x256xf32> to vector<16x128xf32>
    %6 = vector.extract_strided_slice %4 {offsets = [0, 128], sizes = [16, 128], strides = [1, 1]} : vector<16x256xf32> to vector<16x128xf32>
    %cst_5 = arith.constant 0.176776692 : f32
    %7 = vector.broadcast %cst_5 : f32 to vector<16x128xf32>
    %8 = arith.mulf %6, %7 : vector<16x128xf32>
    %9 = math.tanh %5 : vector<16x128xf32>
    %10 = vector.extract_strided_slice %5 {offsets = [0, 0], sizes = [16, 32], strides = [1, 1]} : vector<16x128xf32> to vector<16x32xf32>
    %11 = vector.extract_strided_slice %8 {offsets = [0, 0], sizes = [16, 32], strides = [1, 1]} : vector<16x128xf32> to vector<16x32xf32>
    %cst_6 = arith.constant dense<0.000000e+00> : vector<16x16xf32>
    %12 = tpu.matmul %11, %10, %cst_6 {dimension_numbers = #tpu.dot_dimension_numbers<[1], [1], [0], [0], [0, 0, 1, 0], [], []>} : vector<16x32xf32>, vector<16x32xf32>, vector<16x16xf32> -> vector<16x16xf32>
    %13 = math.exp %12 : vector<16x16xf32>
    %14 = arith.mulf %13, %1 : vector<16x16xf32>
    %cst_7 = arith.constant dense<0.000000e+00> : vector<16xf32>
    %15 = vector.multi_reduction <add>, %14, %cst_7 [1] : vector<16x16xf32> to vector<16xf32>
    %16 = vector.shape_cast %15 : vector<16xf32> to vector<16x1xf32>
    %17 = tpu.reciprocal %16 : vector<16x1xf32> -> vector<16x1xf32>
    %18 = vector.extract_strided_slice %9 {offsets = [0, 0], sizes = [16, 32], strides = [1, 1]} : vector<16x128xf32> to vector<16x32xf32>
    %19 = vector.broadcast %17 : vector<16x1xf32> to vector<16x32xf32>
    %20 = arith.mulf %18, %19 : vector<16x32xf32>
    %cst_8 = arith.constant dense<0.000000e+00> : vector<16x32xf32>
    %21 = tpu.matmul %14, %20, %cst_8 {dimension_numbers = #tpu.dot_dimension_numbers<[1], [0], [0], [1], [0, 0, 1, 1], [], []>} : vector<16x16xf32>, vector<16x32xf32>, vector<16x32xf32> -> vector<16x32xf32>
    %22 = vector.extract_strided_slice %5 {offsets = [0, 32], sizes = [16, 32], strides = [1, 1]} : vector<16x128xf32> to vector<16x32xf32>
    %23 = vector.extract_strided_slice %8 {offsets = [0, 32], sizes = [16, 32], strides = [1, 1]} : vector<16x128xf32> to vector<16x32xf32>
    %cst_9 = arith.constant dense<0.000000e+00> : vector<16x16xf32>
    %24 = tpu.matmul %23, %22, %cst_9 {dimension_numbers = #tpu.dot_dimension_numbers<[1], [1], [0], [0], [0, 0, 1, 0], [], []>} : vector<16x32xf32>, vector<16x32xf32>, vector<16x16xf32> -> vector<16x16xf32>
    %25 = math.exp %24 : vector<16x16xf32>
    %26 = arith.mulf %25, %1 : vector<16x16xf32>
    %cst_10 = arith.constant dense<0.000000e+00> : vector<16xf32>
    %27 = vector.multi_reduction <add>, %26, %cst_10 [1] : vector<16x16xf32> to vector<16xf32>
    %28 = vector.shape_cast %27 : vector<16xf32> to vector<16x1xf32>
    %29 = tpu.reciprocal %28 : vector<16x1xf32> -> vector<16x1xf32>
    %30 = vector.extract_strided_slice %9 {offsets = [0, 32], sizes = [16, 32], strides = [1, 1]} : vector<16x128xf32> to vector<16x32xf32>
    %31 = vector.broadcast %29 : vector<16x1xf32> to vector<16x32xf32>
    %32 = arith.mulf %30, %31 : vector<16x32xf32>
    %cst_11 = arith.constant dense<0.000000e+00> : vector<16x32xf32>
    %33 = tpu.matmul %26, %32, %cst_11 {dimension_numbers = #tpu.dot_dimension_numbers<[1], [0], [0], [1], [0, 0, 1, 1], [], []>} : vector<16x16xf32>, vector<16x32xf32>, vector<16x32xf32> -> vector<16x32xf32>
    %34 = arith.addf %21, %33 : vector<16x32xf32>
    %35 = vector.extract_strided_slice %5 {offsets = [0, 64], sizes = [16, 32], strides = [1, 1]} : vector<16x128xf32> to vector<16x32xf32>
    %36 = vector.extract_strided_slice %8 {offsets = [0, 64], sizes = [16, 32], strides = [1, 1]} : vector<16x128xf32> to vector<16x32xf32>
    %cst_12 = arith.constant dense<0.000000e+00> : vector<16x16xf32>
    %37 = tpu.matmul %36, %35, %cst_12 {dimension_numbers = #tpu.dot_dimension_numbers<[1], [1], [0], [0], [0, 0, 1, 0], [], []>} : vector<16x32xf32>, vector<16x32xf32>, vector<16x16xf32> -> vector<16x16xf32>
    %38 = math.exp %37 : vector<16x16xf32>
    %39 = arith.mulf %38, %1 : vector<16x16xf32>
    %cst_13 = arith.constant dense<0.000000e+00> : vector<16xf32>
    %40 = vector.multi_reduction <add>, %39, %cst_13 [1] : vector<16x16xf32> to vector<16xf32>
    %41 = vector.shape_cast %40 : vector<16xf32> to vector<16x1xf32>
    %42 = tpu.reciprocal %41 : vector<16x1xf32> -> vector<16x1xf32>
    %43 = vector.extract_strided_slice %9 {offsets = [0, 64], sizes = [16, 32], strides = [1, 1]} : vector<16x128xf32> to vector<16x32xf32>
    %44 = vector.broadcast %42 : vector<16x1xf32> to vector<16x32xf32>
    %45 = arith.mulf %43, %44 : vector<16x32xf32>
    %cst_14 = arith.constant dense<0.000000e+00> : vector<16x32xf32>
    %46 = tpu.matmul %39, %45, %cst_14 {dimension_numbers = #tpu.dot_dimension_numbers<[1], [0], [0], [1], [0, 0, 1, 1], [], []>} : vector<16x16xf32>, vector<16x32xf32>, vector<16x32xf32> -> vector<16x32xf32>
    %47 = arith.addf %34, %46 : vector<16x32xf32>
    %48 = vector.extract_strided_slice %5 {offsets = [0, 96], sizes = [16, 32], strides = [1, 1]} : vector<16x128xf32> to vector<16x32xf32>
    %49 = vector.extract_strided_slice %8 {offsets = [0, 96], sizes = [16, 32], strides = [1, 1]} : vector<16x128xf32> to vector<16x32xf32>
    %cst_15 = arith.constant dense<0.000000e+00> : vector<16x16xf32>
    %50 = tpu.matmul %49, %48, %cst_15 {dimension_numbers = #tpu.dot_dimension_numbers<[1], [1], [0], [0], [0, 0, 1, 0], [], []>} : vector<16x32xf32>, vector<16x32xf32>, vector<16x16xf32> -> vector<16x16xf32>
    %51 = math.exp %50 : vector<16x16xf32>
    %52 = arith.mulf %51, %1 : vector<16x16xf32>
    %cst_16 = arith.constant dense<0.000000e+00> : vector<16xf32>
    %53 = vector.multi_reduction <add>, %52, %cst_16 [1] : vector<16x16xf32> to vector<16xf32>
    %54 = vector.shape_cast %53 : vector<16xf32> to vector<16x1xf32>
    %55 = tpu.reciprocal %54 : vector<16x1xf32> -> vector<16x1xf32>
    %56 = vector.extract_strided_slice %9 {offsets = [0, 96], sizes = [16, 32], strides = [1, 1]} : vector<16x128xf32> to vector<16x32xf32>
    %57 = vector.broadcast %55 : vector<16x1xf32> to vector<16x32xf32>
    %58 = arith.mulf %56, %57 : vector<16x32xf32>
    %cst_17 = arith.constant dense<0.000000e+00> : vector<16x32xf32>
    %59 = tpu.matmul %52, %58, %cst_17 {dimension_numbers = #tpu.dot_dimension_numbers<[1], [0], [0], [1], [0, 0, 1, 1], [], []>} : vector<16x16xf32>, vector<16x32xf32>, vector<16x32xf32> -> vector<16x32xf32>
    %60 = arith.addf %47, %59 : vector<16x32xf32>
    %cst_18 = arith.constant dense<0.000000e+00> : vector<16x32xf32>
    %61 = tpu.matmul %1, %60, %cst_18 {dimension_numbers = #tpu.dot_dimension_numbers<[1], [0], [0], [1], [0, 0, 1, 1], [], []>} : vector<16x16xf32>, vector<16x32xf32>, vector<16x32xf32> -> vector<16x32xf32>
    %cst_19 = arith.constant 2.500000e-01 : f32
    %62 = vector.broadcast %cst_19 : f32 to vector<16x32xf32>
    %63 = arith.mulf %61, %62 : vector<16x32xf32>
    %c0_20 = arith.constant 0 : index
    %c0_21 = arith.constant 0 : index
    %64 = vector.load %arg3[%c0_20, %c0_21] : memref<32x32xf32, #tpu.memory_space<vmem>>, vector<32x32xf32>
    %cst_22 = arith.constant dense<0.000000e+00> : vector<16x32xf32>
    %65 = tpu.matmul %63, %64, %cst_22 {dimension_numbers = #tpu.dot_dimension_numbers<[1], [0], [0], [1], [0, 0, 1, 1], [], []>} : vector<16x32xf32>, vector<32x32xf32>, vector<16x32xf32> -> vector<16x32xf32>
    %66 = math.tanh %65 : vector<16x32xf32>
    %67 = vector.extract_strided_slice %66 {offsets = [0, 0], sizes = [16, 16], strides = [1, 1]} : vector<16x32xf32> to vector<16x16xf32>
    %68 = vector.extract_strided_slice %66 {offsets = [0, 16], sizes = [16, 16], strides = [1, 1]} : vector<16x32xf32> to vector<16x16xf32>
    %cst_23 = arith.constant 2.500000e-01 : f32
    %69 = vector.broadcast %cst_23 : f32 to vector<16x16xf32>
    %70 = arith.mulf %68, %69 : vector<16x16xf32>
    %71 = math.tanh %67 : vector<16x16xf32>
    %cst_24 = arith.constant dense<0.000000e+00> : vector<16x16xf32>
    %72 = tpu.matmul %70, %67, %cst_24 {dimension_numbers = #tpu.dot_dimension_numbers<[1], [1], [0], [0], [0, 0, 1, 0], [], []>} : vector<16x16xf32>, vector<16x16xf32>, vector<16x16xf32> -> vector<16x16xf32>
    %73 = math.exp %72 : vector<16x16xf32>
    %74 = arith.mulf %73, %1 : vector<16x16xf32>
    %cst_25 = arith.constant dense<0.000000e+00> : vector<16xf32>
    %75 = vector.multi_reduction <add>, %74, %cst_25 [1] : vector<16x16xf32> to vector<16xf32>
    %76 = vector.shape_cast %75 : vector<16xf32> to vector<16x1xf32>
    %77 = tpu.reciprocal %76 : vector<16x1xf32> -> vector<16x1xf32>
    %78 = vector.broadcast %77 : vector<16x1xf32> to vector<16x16xf32>
    %79 = arith.mulf %71, %78 : vector<16x16xf32>
    %cst_26 = arith.constant dense<0.000000e+00> : vector<16x16xf32>
    %80 = tpu.matmul %74, %79, %cst_26 {dimension_numbers = #tpu.dot_dimension_numbers<[1], [0], [0], [1], [0, 0, 1, 1], [], []>} : vector<16x16xf32>, vector<16x16xf32>, vector<16x16xf32> -> vector<16x16xf32>
    %cst_27 = arith.constant dense<0.000000e+00> : vector<16x16xf32>
    %81 = tpu.matmul %1, %80, %cst_27 {dimension_numbers = #tpu.dot_dimension_numbers<[1], [0], [0], [1], [0, 0, 1, 1], [], []>} : vector<16x16xf32>, vector<16x16xf32>, vector<16x16xf32> -> vector<16x16xf32>
    %cst_28 = arith.constant 1.000000e+00 : f32
    %82 = vector.broadcast %cst_28 : f32 to vector<16x16xf32>
    %83 = arith.mulf %81, %82 : vector<16x16xf32>
    %c0_29 = arith.constant 0 : index
    %c0_30 = arith.constant 0 : index
    %84 = vector.load %arg4[%c0_29, %c0_30] : memref<16x16xf32, #tpu.memory_space<vmem>>, vector<16x16xf32>
    %cst_31 = arith.constant dense<0.000000e+00> : vector<16x16xf32>
    %85 = tpu.matmul %83, %84, %cst_31 {dimension_numbers = #tpu.dot_dimension_numbers<[1], [0], [0], [1], [0, 0, 1, 1], [], []>} : vector<16x16xf32>, vector<16x16xf32>, vector<16x16xf32> -> vector<16x16xf32>
    %86 = math.tanh %85 : vector<16x16xf32>
    %87 = vector.extract_strided_slice %86 {offsets = [0, 0], sizes = [16, 8], strides = [1, 1]} : vector<16x16xf32> to vector<16x8xf32>
    %88 = vector.extract_strided_slice %86 {offsets = [0, 8], sizes = [16, 8], strides = [1, 1]} : vector<16x16xf32> to vector<16x8xf32>
    %cst_32 = arith.constant 0.353553385 : f32
    %89 = vector.broadcast %cst_32 : f32 to vector<16x8xf32>
    %90 = arith.mulf %88, %89 : vector<16x8xf32>
    %cst_33 = arith.constant dense<0.000000e+00> : vector<16x16xf32>
    %91 = tpu.matmul %90, %87, %cst_33 {dimension_numbers = #tpu.dot_dimension_numbers<[1], [1], [0], [0], [0, 0, 1, 0], [], []>} : vector<16x8xf32>, vector<16x8xf32>, vector<16x16xf32> -> vector<16x16xf32>
    %92 = math.exp %91 : vector<16x16xf32>
    %93 = arith.mulf %92, %1 : vector<16x16xf32>
    %cst_34 = arith.constant dense<0.000000e+00> : vector<16xf32>
    %94 = vector.multi_reduction <add>, %93, %cst_34 [1] : vector<16x16xf32> to vector<16xf32>
    %95 = vector.shape_cast %94 : vector<16xf32> to vector<16x1xf32>
    %96 = tpu.reciprocal %95 : vector<16x1xf32> -> vector<16x1xf32>
    %97 = vector.broadcast %96 : vector<16x1xf32> to vector<16x8xf32>
    %98 = arith.mulf %87, %97 : vector<16x8xf32>
    %cst_35 = arith.constant dense<0.000000e+00> : vector<16x8xf32>
    %99 = tpu.matmul %93, %98, %cst_35 {dimension_numbers = #tpu.dot_dimension_numbers<[1], [0], [0], [1], [0, 0, 1, 1], [], []>} : vector<16x16xf32>, vector<16x8xf32>, vector<16x8xf32> -> vector<16x8xf32>
    %cst_36 = arith.constant dense<0.000000e+00> : vector<16x8xf32>
    %100 = tpu.matmul %1, %99, %cst_36 {dimension_numbers = #tpu.dot_dimension_numbers<[1], [0], [0], [1], [0, 0, 1, 1], [], []>} : vector<16x16xf32>, vector<16x8xf32>, vector<16x8xf32> -> vector<16x8xf32>
    %cst_37 = arith.constant 1.000000e+00 : f32
    %101 = vector.broadcast %cst_37 : f32 to vector<16x8xf32>
    %102 = arith.mulf %100, %101 : vector<16x8xf32>
    %cst_38 = arith.constant dense<0.000000e+00> : vector<16x16xf32>
    %103 = tpu.matmul %102, %102, %cst_38 {dimension_numbers = #tpu.dot_dimension_numbers<[1], [1], [0], [0], [0, 0, 1, 0], [], []>} : vector<16x8xf32>, vector<16x8xf32>, vector<16x16xf32> -> vector<16x16xf32>
    %104 = arith.negf %103 : vector<16x16xf32>
    %105 = math.exp %104 : vector<16x16xf32>
    %cst_39 = arith.constant 1.000000e+00 : f32
    %106 = vector.broadcast %cst_39 : f32 to vector<16x16xf32>
    %107 = arith.addf %106, %105 : vector<16x16xf32>
    %108 = arith.divf %106, %107 : vector<16x16xf32>
    %c0_40 = arith.constant 0 : index
    %c0_41 = arith.constant 0 : index
    %109 = vector.load %arg9[%c0_40, %c0_41] : memref<16x16xf32, #tpu.memory_space<vmem>>, vector<16x16xf32>
    tpu.vector_store %arg9[%c0_40, %c0_41], %108 {strides = array<i32>} : memref<16x16xf32, #tpu.memory_space<vmem>>, vector<16x16xf32>,
    %c0_42 = arith.constant 0 : index
    %c0_43 = arith.constant 0 : index
    %110 = vector.load %arg5[%c0_42, %c0_43] : memref<8x128xf32, #tpu.memory_space<vmem>>, vector<8x128xf32>
    %cst_44 = arith.constant dense<0.000000e+00> : vector<16x128xf32>
    %111 = tpu.matmul %102, %110, %cst_44 {dimension_numbers = #tpu.dot_dimension_numbers<[1], [0], [0], [1], [0, 0, 1, 1], [], []>} : vector<16x8xf32>, vector<8x128xf32>, vector<16x128xf32> -> vector<16x128xf32>
    %112 = math.tanh %111 : vector<16x128xf32>
    %113 = vector.extract_strided_slice %112 {offsets = [0, 0], sizes = [16, 64], strides = [1, 1]} : vector<16x128xf32> to vector<16x64xf32>
    %114 = vector.extract_strided_slice %112 {offsets = [0, 64], sizes = [16, 64], strides = [1, 1]} : vector<16x128xf32> to vector<16x64xf32>
    %cst_45 = arith.constant 2.500000e-01 : f32
    %115 = vector.broadcast %cst_45 : f32 to vector<16x64xf32>
    %116 = arith.mulf %114, %115 : vector<16x64xf32>
    %117 = math.tanh %113 : vector<16x64xf32>
    %118 = vector.extract_strided_slice %113 {offsets = [0, 0], sizes = [16, 16], strides = [1, 1]} : vector<16x64xf32> to vector<16x16xf32>
    %119 = vector.extract_strided_slice %116 {offsets = [0, 0], sizes = [16, 16], strides = [1, 1]} : vector<16x64xf32> to vector<16x16xf32>
    %cst_46 = arith.constant dense<0.000000e+00> : vector<16x16xf32>
    %120 = tpu.matmul %119, %118, %cst_46 {dimension_numbers = #tpu.dot_dimension_numbers<[1], [1], [0], [0], [0, 0, 1, 0], [], []>} : vector<16x16xf32>, vector<16x16xf32>, vector<16x16xf32> -> vector<16x16xf32>
    %121 = math.exp %120 : vector<16x16xf32>
    %122 = arith.mulf %121, %1 : vector<16x16xf32>
    %cst_47 = arith.constant dense<0.000000e+00> : vector<16xf32>
    %123 = vector.multi_reduction <add>, %122, %cst_47 [1] : vector<16x16xf32> to vector<16xf32>
    %124 = vector.shape_cast %123 : vector<16xf32> to vector<16x1xf32>
    %125 = tpu.reciprocal %124 : vector<16x1xf32> -> vector<16x1xf32>
    %126 = vector.extract_strided_slice %117 {offsets = [0, 0], sizes = [16, 16], strides = [1, 1]} : vector<16x64xf32> to vector<16x16xf32>
    %127 = vector.broadcast %125 : vector<16x1xf32> to vector<16x16xf32>
    %128 = arith.mulf %126, %127 : vector<16x16xf32>
    %cst_48 = arith.constant dense<0.000000e+00> : vector<16x16xf32>
    %129 = tpu.matmul %122, %128, %cst_48 {dimension_numbers = #tpu.dot_dimension_numbers<[1], [0], [0], [1], [0, 0, 1, 1], [], []>} : vector<16x16xf32>, vector<16x16xf32>, vector<16x16xf32> -> vector<16x16xf32>
    %130 = vector.extract_strided_slice %113 {offsets = [0, 16], sizes = [16, 16], strides = [1, 1]} : vector<16x64xf32> to vector<16x16xf32>
    %131 = vector.extract_strided_slice %116 {offsets = [0, 16], sizes = [16, 16], strides = [1, 1]} : vector<16x64xf32> to vector<16x16xf32>
    %cst_49 = arith.constant dense<0.000000e+00> : vector<16x16xf32>
    %132 = tpu.matmul %131, %130, %cst_49 {dimension_numbers = #tpu.dot_dimension_numbers<[1], [1], [0], [0], [0, 0, 1, 0], [], []>} : vector<16x16xf32>, vector<16x16xf32>, vector<16x16xf32> -> vector<16x16xf32>
    %133 = math.exp %132 : vector<16x16xf32>
    %134 = arith.mulf %133, %1 : vector<16x16xf32>
    %cst_50 = arith.constant dense<0.000000e+00> : vector<16xf32>
    %135 = vector.multi_reduction <add>, %134, %cst_50 [1] : vector<16x16xf32> to vector<16xf32>
    %136 = vector.shape_cast %135 : vector<16xf32> to vector<16x1xf32>
    %137 = tpu.reciprocal %136 : vector<16x1xf32> -> vector<16x1xf32>
    %138 = vector.extract_strided_slice %117 {offsets = [0, 16], sizes = [16, 16], strides = [1, 1]} : vector<16x64xf32> to vector<16x16xf32>
    %139 = vector.broadcast %137 : vector<16x1xf32> to vector<16x16xf32>
    %140 = arith.mulf %138, %139 : vector<16x16xf32>
    %cst_51 = arith.constant dense<0.000000e+00> : vector<16x16xf32>
    %141 = tpu.matmul %134, %140, %cst_51 {dimension_numbers = #tpu.dot_dimension_numbers<[1], [0], [0], [1], [0, 0, 1, 1], [], []>} : vector<16x16xf32>, vector<16x16xf32>, vector<16x16xf32> -> vector<16x16xf32>
    %142 = arith.addf %129, %141 : vector<16x16xf32>
    %143 = vector.extract_strided_slice %113 {offsets = [0, 32], sizes = [16, 16], strides = [1, 1]} : vector<16x64xf32> to vector<16x16xf32>
    %144 = vector.extract_strided_slice %116 {offsets = [0, 32], sizes = [16, 16], strides = [1, 1]} : vector<16x64xf32> to vector<16x16xf32>
    %cst_52 = arith.constant dense<0.000000e+00> : vector<16x16xf32>
    %145 = tpu.matmul %144, %143, %cst_52 {dimension_numbers = #tpu.dot_dimension_numbers<[1], [1], [0], [0], [0, 0, 1, 0], [], []>} : vector<16x16xf32>, vector<16x16xf32>, vector<16x16xf32> -> vector<16x16xf32>
    %146 = math.exp %145 : vector<16x16xf32>
    %147 = arith.mulf %146, %1 : vector<16x16xf32>
    %cst_53 = arith.constant dense<0.000000e+00> : vector<16xf32>
    %148 = vector.multi_reduction <add>, %147, %cst_53 [1] : vector<16x16xf32> to vector<16xf32>
    %149 = vector.shape_cast %148 : vector<16xf32> to vector<16x1xf32>
    %150 = tpu.reciprocal %149 : vector<16x1xf32> -> vector<16x1xf32>
    %151 = vector.extract_strided_slice %117 {offsets = [0, 32], sizes = [16, 16], strides = [1, 1]} : vector<16x64xf32> to vector<16x16xf32>
    %152 = vector.broadcast %150 : vector<16x1xf32> to vector<16x16xf32>
    %153 = arith.mulf %151, %152 : vector<16x16xf32>
    %cst_54 = arith.constant dense<0.000000e+00> : vector<16x16xf32>
    %154 = tpu.matmul %147, %153, %cst_54 {dimension_numbers = #tpu.dot_dimension_numbers<[1], [0], [0], [1], [0, 0, 1, 1], [], []>} : vector<16x16xf32>, vector<16x16xf32>, vector<16x16xf32> -> vector<16x16xf32>
    %155 = arith.addf %142, %154 : vector<16x16xf32>
    %156 = vector.extract_strided_slice %113 {offsets = [0, 48], sizes = [16, 16], strides = [1, 1]} : vector<16x64xf32> to vector<16x16xf32>
    %157 = vector.extract_strided_slice %116 {offsets = [0, 48], sizes = [16, 16], strides = [1, 1]} : vector<16x64xf32> to vector<16x16xf32>
    %cst_55 = arith.constant dense<0.000000e+00> : vector<16x16xf32>
    %158 = tpu.matmul %157, %156, %cst_55 {dimension_numbers = #tpu.dot_dimension_numbers<[1], [1], [0], [0], [0, 0, 1, 0], [], []>} : vector<16x16xf32>, vector<16x16xf32>, vector<16x16xf32> -> vector<16x16xf32>
    %159 = math.exp %158 : vector<16x16xf32>
    %160 = arith.mulf %159, %1 : vector<16x16xf32>
    %cst_56 = arith.constant dense<0.000000e+00> : vector<16xf32>
    %161 = vector.multi_reduction <add>, %160, %cst_56 [1] : vector<16x16xf32> to vector<16xf32>
    %162 = vector.shape_cast %161 : vector<16xf32> to vector<16x1xf32>
    %163 = tpu.reciprocal %162 : vector<16x1xf32> -> vector<16x1xf32>
    %164 = vector.extract_strided_slice %117 {offsets = [0, 48], sizes = [16, 16], strides = [1, 1]} : vector<16x64xf32> to vector<16x16xf32>
    %165 = vector.broadcast %163 : vector<16x1xf32> to vector<16x16xf32>
    %166 = arith.mulf %164, %165 : vector<16x16xf32>
    %cst_57 = arith.constant dense<0.000000e+00> : vector<16x16xf32>
    %167 = tpu.matmul %160, %166, %cst_57 {dimension_numbers = #tpu.dot_dimension_numbers<[1], [0], [0], [1], [0, 0, 1, 1], [], []>} : vector<16x16xf32>, vector<16x16xf32>, vector<16x16xf32> -> vector<16x16xf32>
    %168 = arith.addf %155, %167 : vector<16x16xf32>
    %cst_58 = arith.constant dense<0.000000e+00> : vector<16x16xf32>
    %169 = tpu.matmul %1, %168, %cst_58 {dimension_numbers = #tpu.dot_dimension_numbers<[1], [0], [0], [1], [0, 0, 1, 1], [], []>} : vector<16x16xf32>, vector<16x16xf32>, vector<16x16xf32> -> vector<16x16xf32>
    %cst_59 = arith.constant 2.500000e-01 : f32
    %170 = vector.broadcast %cst_59 : f32 to vector<16x16xf32>
    %171 = arith.mulf %169, %170 : vector<16x16xf32>
    %c0_60 = arith.constant 0 : index
    %c0_61 = arith.constant 0 : index
    %172 = vector.load %arg6[%c0_60, %c0_61] : memref<16x64xf32, #tpu.memory_space<vmem>>, vector<16x64xf32>
    %cst_62 = arith.constant dense<0.000000e+00> : vector<16x64xf32>
    %173 = tpu.matmul %171, %172, %cst_62 {dimension_numbers = #tpu.dot_dimension_numbers<[1], [0], [0], [1], [0, 0, 1, 1], [], []>} : vector<16x16xf32>, vector<16x64xf32>, vector<16x64xf32> -> vector<16x64xf32>
    %174 = math.tanh %173 : vector<16x64xf32>
    %175 = vector.extract_strided_slice %174 {offsets = [0, 0], sizes = [16, 32], strides = [1, 1]} : vector<16x64xf32> to vector<16x32xf32>
    %176 = vector.extract_strided_slice %174 {offsets = [0, 32], sizes = [16, 32], strides = [1, 1]} : vector<16x64xf32> to vector<16x32xf32>
    %cst_63 = arith.constant 0.176776692 : f32
    %177 = vector.broadcast %cst_63 : f32 to vector<16x32xf32>
    %178 = arith.mulf %176, %177 : vector<16x32xf32>
    %179 = math.tanh %175 : vector<16x32xf32>
    %cst_64 = arith.constant dense<0.000000e+00> : vector<16x16xf32>
    %180 = tpu.matmul %178, %175, %cst_64 {dimension_numbers = #tpu.dot_dimension_numbers<[1], [1], [0], [0], [0, 0, 1, 0], [], []>} : vector<16x32xf32>, vector<16x32xf32>, vector<16x16xf32> -> vector<16x16xf32>
    %181 = math.exp %180 : vector<16x16xf32>
    %182 = arith.mulf %181, %1 : vector<16x16xf32>
    %cst_65 = arith.constant dense<0.000000e+00> : vector<16xf32>
    %183 = vector.multi_reduction <add>, %182, %cst_65 [1] : vector<16x16xf32> to vector<16xf32>
    %184 = vector.shape_cast %183 : vector<16xf32> to vector<16x1xf32>
    %185 = tpu.reciprocal %184 : vector<16x1xf32> -> vector<16x1xf32>
    %186 = vector.broadcast %185 : vector<16x1xf32> to vector<16x32xf32>
    %187 = arith.mulf %179, %186 : vector<16x32xf32>
    %cst_66 = arith.constant dense<0.000000e+00> : vector<16x32xf32>
    %188 = tpu.matmul %182, %187, %cst_66 {dimension_numbers = #tpu.dot_dimension_numbers<[1], [0], [0], [1], [0, 0, 1, 1], [], []>} : vector<16x16xf32>, vector<16x32xf32>, vector<16x32xf32> -> vector<16x32xf32>
    %cst_67 = arith.constant dense<0.000000e+00> : vector<16x32xf32>
    %189 = tpu.matmul %1, %188, %cst_67 {dimension_numbers = #tpu.dot_dimension_numbers<[1], [0], [0], [1], [0, 0, 1, 1], [], []>} : vector<16x16xf32>, vector<16x32xf32>, vector<16x32xf32> -> vector<16x32xf32>
    %cst_68 = arith.constant 1.000000e+00 : f32
    %190 = vector.broadcast %cst_68 : f32 to vector<16x32xf32>
    %191 = arith.mulf %189, %190 : vector<16x32xf32>
    %c0_69 = arith.constant 0 : index
    %c0_70 = arith.constant 0 : index
    %192 = vector.load %arg7[%c0_69, %c0_70] : memref<32x32xf32, #tpu.memory_space<vmem>>, vector<32x32xf32>
    %cst_71 = arith.constant dense<0.000000e+00> : vector<16x32xf32>
    %193 = tpu.matmul %191, %192, %cst_71 {dimension_numbers = #tpu.dot_dimension_numbers<[1], [0], [0], [1], [0, 0, 1, 1], [], []>} : vector<16x32xf32>, vector<32x32xf32>, vector<16x32xf32> -> vector<16x32xf32>
    %194 = math.tanh %193 : vector<16x32xf32>
    %195 = vector.extract_strided_slice %194 {offsets = [0, 0], sizes = [16, 16], strides = [1, 1]} : vector<16x32xf32> to vector<16x16xf32>
    %196 = vector.extract_strided_slice %194 {offsets = [0, 16], sizes = [16, 16], strides = [1, 1]} : vector<16x32xf32> to vector<16x16xf32>
    %cst_72 = arith.constant 2.500000e-01 : f32
    %197 = vector.broadcast %cst_72 : f32 to vector<16x16xf32>
    %198 = arith.mulf %196, %197 : vector<16x16xf32>
    %199 = math.tanh %195 : vector<16x16xf32>
    %cst_73 = arith.constant dense<0.000000e+00> : vector<16x16xf32>
    %200 = tpu.matmul %198, %195, %cst_73 {dimension_numbers = #tpu.dot_dimension_numbers<[1], [1], [0], [0], [0, 0, 1, 0], [], []>} : vector<16x16xf32>, vector<16x16xf32>, vector<16x16xf32> -> vector<16x16xf32>
    %201 = math.exp %200 : vector<16x16xf32>
    %202 = arith.mulf %201, %1 : vector<16x16xf32>
    %cst_74 = arith.constant dense<0.000000e+00> : vector<16xf32>
    %203 = vector.multi_reduction <add>, %202, %cst_74 [1] : vector<16x16xf32> to vector<16xf32>
    %204 = vector.shape_cast %203 : vector<16xf32> to vector<16x1xf32>
    %205 = tpu.reciprocal %204 : vector<16x1xf32> -> vector<16x1xf32>
    %206 = vector.broadcast %205 : vector<16x1xf32> to vector<16x16xf32>
    %207 = arith.mulf %199, %206 : vector<16x16xf32>
    %cst_75 = arith.constant dense<0.000000e+00> : vector<16x16xf32>
    %208 = tpu.matmul %202, %207, %cst_75 {dimension_numbers = #tpu.dot_dimension_numbers<[1], [0], [0], [1], [0, 0, 1, 1], [], []>} : vector<16x16xf32>, vector<16x16xf32>, vector<16x16xf32> -> vector<16x16xf32>
    %cst_76 = arith.constant dense<0.000000e+00> : vector<16x16xf32>
    %209 = tpu.matmul %1, %208, %cst_76 {dimension_numbers = #tpu.dot_dimension_numbers<[1], [0], [0], [1], [0, 0, 1, 1], [], []>} : vector<16x16xf32>, vector<16x16xf32>, vector<16x16xf32> -> vector<16x16xf32>
    %cst_77 = arith.constant 1.000000e+00 : f32
    %210 = vector.broadcast %cst_77 : f32 to vector<16x16xf32>
    %211 = arith.mulf %209, %210 : vector<16x16xf32>
    %c0_78 = arith.constant 0 : index
    %c0_79 = arith.constant 0 : index
    %212 = vector.load %arg9[%c0_78, %c0_79] : memref<16x16xf32, #tpu.memory_space<vmem>>, vector<16x16xf32>
    %cst_80 = arith.constant dense<0.000000e+00> : vector<16x16xf32>
    %213 = tpu.matmul %211, %211, %cst_80 {dimension_numbers = #tpu.dot_dimension_numbers<[1], [1], [0], [0], [0, 0, 1, 0], [], []>} : vector<16x16xf32>, vector<16x16xf32>, vector<16x16xf32> -> vector<16x16xf32>
    %214 = arith.negf %213 : vector<16x16xf32>
    %215 = math.exp %214 : vector<16x16xf32>
    %cst_81 = arith.constant 1.000000e+00 : f32
    %216 = vector.broadcast %cst_81 : f32 to vector<16x16xf32>
    %217 = arith.addf %216, %215 : vector<16x16xf32>
    %218 = arith.divf %216, %217 : vector<16x16xf32>
    %219 = arith.addf %212, %218 : vector<16x16xf32>
    %c0_82 = arith.constant 0 : index
    %c0_83 = arith.constant 0 : index
    %220 = vector.load %arg9[%c0_82, %c0_83] : memref<16x16xf32, #tpu.memory_space<vmem>>, vector<16x16xf32>
    tpu.vector_store %arg9[%c0_82, %c0_83], %219 {strides = array<i32>} : memref<16x16xf32, #tpu.memory_space<vmem>>, vector<16x16xf32>,
    %cst_84 = arith.constant 0.000000e+00 : f32
    %221 = vector.broadcast %cst_84 : f32 to vector<16x104xf32>
    %222 = tpu.concatenate %102, %211, %221 in 1 : vector<16x8xf32>, vector<16x16xf32>, vector<16x104xf32> -> vector<16x128xf32>
    %c0_85 = arith.constant 0 : index
    %c0_86 = arith.constant 0 : index
    %223 = vector.load %arg8[%c0_85, %c0_86] : memref<16x128xf32, #tpu.memory_space<vmem>>, vector<16x128xf32>
    tpu.vector_store %arg8[%c0_85, %c0_86], %222 {strides = array<i32>} : memref<16x128xf32, #tpu.memory_space<vmem>>, vector<16x128xf32>,
    return
  }
}

</mosaic_0001>

<llo_original>
// kernel: tpu_custom_call.1
$region0: #{tpu_custom_call.1}
  #allocation0 [shape = 'u32[]', space=smem, size = 0x4, offset = 0x4, fixed_abs, tag = 'smem constant byte address 0x4 - core index']
  #allocation1 [shape = 'u32[72,128]{1,0:T(1,128)}', space=vmem, size = 0x9000, scoped, tag = 'internal scratch']
  %s0 = inlined_call_operand.hbm [shape: f32[16,16], index: 0, kind: input, shape index: {}]
  %s1 = inlined_call_operand.hbm [shape: f32[16,16], index: 1, kind: input, shape index: {}]
  %s2 = inlined_call_operand.hbm [shape: f32[16,256], index: 2, kind: input, shape index: {}]
  %s3 = inlined_call_operand.hbm [shape: f32[32,32], index: 3, kind: input, shape index: {}]
  %s4 = inlined_call_operand.hbm [shape: f32[16,16], index: 4, kind: input, shape index: {}]
  %s5 = inlined_call_operand.hbm [shape: f32[8,128], index: 5, kind: input, shape index: {}]
  %s6 = inlined_call_operand.hbm [shape: f32[16,64], index: 6, kind: input, shape index: {}]
  %s7 = inlined_call_operand.hbm [shape: f32[32,32], index: 7, kind: input, shape index: {}]
  %s8 = inlined_call_operand.hbm [shape: f32[16,128], index: 8, kind: output, shape index: {0}]
  %s9 = inlined_call_operand.hbm [shape: f32[16,16], index: 9, kind: output, shape index: {1}]
  %10 = xla_tuple %s8, %s9
  %s11 = sld [smem:[#allocation0]]
  $region82: #{tpu_custom_call.1} parent=0
    _
  %s13 = ssub.s32 1, %s11
  %s14 = scalar_select 0, %s13, %s11
  $region1: #{tpu_custom_call.1} parent=0
    #allocation2 [shape = 'u8[8192]{0}', space=vmem, size = 0x2000, scoped, tag = 'input window, operand 0, single buffered']
    #allocation3 [shape = 's32[1]{0}', space=sflag, size = 0x4, scoped, tag = 'scoped memory for tpu_custom_call.1']
    #allocation4 [shape = 's32[1]{0}', space=sflag, size = 0x4, scoped, tag = 'scoped memory for tpu_custom_call.1']
    #allocation5 [shape = 'u8[8192]{0}', space=vmem, size = 0x2000, scoped, tag = 'input window, operand 1, single buffered']
    #allocation6 [shape = 's32[1]{0}', space=sflag, size = 0x4, scoped, tag = 'scoped memory for tpu_custom_call.1']
    #allocation7 [shape = 'u8[16384]{0}', space=vmem, size = 0x4000, scoped, tag = 'input window, operand 2, single buffered']
    #allocation8 [shape = 'u8[16384]{0}', space=vmem, size = 0x4000, scoped, tag = 'input window, operand 3, single buffered']
    #allocation9 [shape = 's32[1]{0}', space=sflag, size = 0x4, scoped, tag = 'scoped memory for tpu_custom_call.1']
    #allocation10 [shape = 'u8[8192]{0}', space=vmem, size = 0x2000, scoped, tag = 'input window, operand 4, single buffered']
    #allocation11 [shape = 'u8[4096]{0}', space=vmem, size = 0x1000, scoped, tag = 'input window, operand 5, single buffered']
    #allocation12 [shape = 's32[1]{0}', space=sflag, size = 0x4, scoped, tag = 'scoped memory for tpu_custom_call.1']
    #allocation13 [shape = 'u8[8192]{0}', space=vmem, size = 0x2000, scoped, tag = 'input window, operand 6, single buffered']
    #allocation14 [shape = 'u8[16384]{0}', space=vmem, size = 0x4000, scoped, tag = 'input window, operand 7, single buffered']
    #allocation15 [shape = 's32[1]{0}', space=sflag, size = 0x4, scoped, tag = 'scoped memory for tpu_custom_call.1']
    #allocation16 [shape = 'u8[8192]{0}', space=vmem, size = 0x2000, scoped, tag = 'output window, operand 0, single buffered']
    #allocation17 [shape = 'u8[8192]{0}', space=vmem, size = 0x2000, scoped, tag = 'output window, operand 1, single buffered']
    #allocation18 [shape = 's32[1]{0}', space=sflag, size = 0x4, scoped, tag = 'scoped memory for tpu_custom_call.1']
    %15 = vsyncpa [#allocation3], 0
    %16 = vsyncpa [#allocation6], 0
    %17 = vsyncpa [#allocation9], 0
    %18 = vsyncpa [#allocation12], 0
    %19 = vsyncpa [#allocation15], 0
    %20 = vsyncpa [#allocation4], 0
    %21 = vsyncpa [#allocation18], 0
    // Predicated region
    $region2: #{tpu_custom_call.1} parent=1 // pred_check
      _
    $region3: #{tpu_custom_call.1} parent=1 // pred_check_branch
      %23 = sbr.rel (0) target = $region5
    $region4: #{tpu_custom_call.1} parent=1 // pred_region
      %25 = vsyncadd [#allocation3], 0
      %s26 = sshll.u32 %s0, 4
      %s27 = int_to_ptr.hbm [resolvable:$true] %s26
      %s28 = sshll.u32 [#allocation2], 4
      %s29 = int_to_ptr.vmem [resolvable:$true] %s28
      %34 = dma.hbm_to_vmem [thread:$0]  %s27, 256, %s29, [#allocation3], 128, 128, 8
    $region5: #{tpu_custom_call.1} parent=1 // pred_fallthru
      _
    // Predicated region
    $region6: #{tpu_custom_call.1} parent=1 // pred_check
      _
    $region7: #{tpu_custom_call.1} parent=1 // pred_check_branch
      %36 = sbr.rel (0) target = $region9
    $region8: #{tpu_custom_call.1} parent=1 // pred_region
      %38 = vsyncadd [#allocation6], 0
      %s39 = sshll.u32 %s1, 4
      %s40 = int_to_ptr.hbm [resolvable:$true] %s39
      %s41 = sshll.u32 [#allocation5], 4
      %s42 = int_to_ptr.vmem [resolvable:$true] %s41
      %47 = dma.hbm_to_vmem [thread:$0]  %s40, 256, %s42, [#allocation6], 128, 128, 8
    $region9: #{tpu_custom_call.1} parent=1 // pred_fallthru
      _
    // Predicated region
    $region10: #{tpu_custom_call.1} parent=1 // pred_check
      _
    $region11: #{tpu_custom_call.1} parent=1 // pred_check_branch
      %49 = sbr.rel (0) target = $region13
    $region12: #{tpu_custom_call.1} parent=1 // pred_region
      %51 = vsyncadd [#allocation6], 0
      %s52 = sshll.u32 %s2, 4
      %s53 = int_to_ptr.hbm [resolvable:$true] %s52
      %s54 = sshll.u32 [#allocation7], 4
      %s55 = int_to_ptr.vmem [resolvable:$true] %s54
      %60 = dma.hbm_to_vmem [thread:$0]  %s53, 512, %s55, [#allocation6], 256, 256, 16
    $region13: #{tpu_custom_call.1} parent=1 // pred_fallthru
      _
    // Predicated region
    $region14: #{tpu_custom_call.1} parent=1 // pred_check
      _
    $region15: #{tpu_custom_call.1} parent=1 // pred_check_branch
      %62 = sbr.rel (0) target = $region17
    $region16: #{tpu_custom_call.1} parent=1 // pred_region
      %64 = vsyncadd [#allocation9], 0
      %s65 = sshll.u32 %s3, 4
      %s66 = int_to_ptr.hbm [resolvable:$true] %s65
      %s67 = sshll.u32 [#allocation8], 4
      %s68 = int_to_ptr.vmem [resolvable:$true] %s67
      %73 = dma.hbm_to_vmem [thread:$0]  %s66, 512, %s68, [#allocation9], 128, 128, 8
    $region17: #{tpu_custom_call.1} parent=1 // pred_fallthru
      _
    // Predicated region
    $region18: #{tpu_custom_call.1} parent=1 // pred_check
      _
    $region19: #{tpu_custom_call.1} parent=1 // pred_check_branch
      %75 = sbr.rel (0) target = $region21
    $region20: #{tpu_custom_call.1} parent=1 // pred_region
      %77 = vsyncadd [#allocation9], 0
      %s78 = sshll.u32 %s4, 4
      %s79 = int_to_ptr.hbm [resolvable:$true] %s78
      %s80 = sshll.u32 [#allocation10], 4
      %s81 = int_to_ptr.vmem [resolvable:$true] %s80
      %86 = dma.hbm_to_vmem [thread:$0]  %s79, 256, %s81, [#allocation9], 128, 128, 8
    $region21: #{tpu_custom_call.1} parent=1 // pred_fallthru
      _
    // Predicated region
    $region22: #{tpu_custom_call.1} parent=1 // pred_check
      _
    $region23: #{tpu_custom_call.1} parent=1 // pred_check_branch
      %88 = sbr.rel (0) target = $region25
    $region24: #{tpu_custom_call.1} parent=1 // pred_region
      %90 = vsyncadd [#allocation12], 0
      %s92 = sshll.u32 %s5, 4
      %s93 = int_to_ptr.hbm [resolvable:$true] %s92
      %s94 = sshll.u32 [#allocation11], 4
      %s95 = int_to_ptr.vmem [resolvable:$true] %s94
      %97 = dma.hbm_to_vmem [thread:$0]  %s93, 128, %s95, [#allocation12]
    $region25: #{tpu_custom_call.1} parent=1 // pred_fallthru
      _
    // Predicated region
    $region26: #{tpu_custom_call.1} parent=1 // pred_check
      _
    $region27: #{tpu_custom_call.1} parent=1 // pred_check_branch
      %99 = sbr.rel (0) target = $region29
    $region28: #{tpu_custom_call.1} parent=1 // pred_region
      %101 = vsyncadd [#allocation12], 0
      %s102 = sshll.u32 %s6, 4
      %s103 = int_to_ptr.hbm [resolvable:$true] %s102
      %s104 = sshll.u32 [#allocation13], 4
      %s105 = int_to_ptr.vmem [resolvable:$true] %s104
      %110 = dma.hbm_to_vmem [thread:$0]  %s103, 256, %s105, [#allocation12], 128, 128, 8
    $region29: #{tpu_custom_call.1} parent=1 // pred_fallthru
      _
    // Predicated region
    $region30: #{tpu_custom_call.1} parent=1 // pred_check
      _
    $region31: #{tpu_custom_call.1} parent=1 // pred_check_branch
      %112 = sbr.rel (0) target = $region33
    $region32: #{tpu_custom_call.1} parent=1 // pred_region
      %114 = vsyncadd [#allocation15], 0
      %s115 = sshll.u32 %s7, 4
      %s116 = int_to_ptr.hbm [resolvable:$true] %s115
      %s117 = sshll.u32 [#allocation14], 4
      %s118 = int_to_ptr.vmem [resolvable:$true] %s117
      %123 = dma.hbm_to_vmem [thread:$0]  %s116, 512, %s118, [#allocation15], 128, 128, 8
    $region33: #{tpu_custom_call.1} parent=1 // pred_fallthru
      _
    // Predicated region
    $region34: #{tpu_custom_call.1} parent=1 // pred_check
      _
    $region35: #{tpu_custom_call.1} parent=1 // pred_check_branch
      %125 = sbr.rel (0) target = $region37
    $region36: #{tpu_custom_call.1} parent=1 // pred_region
      %127 = dma.done [#allocation3], 256
    $region37: #{tpu_custom_call.1} parent=1 // pred_fallthru
      _
    // Predicated region
    $region38: #{tpu_custom_call.1} parent=1 // pred_check
      _
    $region39: #{tpu_custom_call.1} parent=1 // pred_check_branch
      %129 = sbr.rel (0) target = $region41
    $region40: #{tpu_custom_call.1} parent=1 // pred_region
      %131 = dma.done [#allocation6], 256
    $region41: #{tpu_custom_call.1} parent=1 // pred_fallthru
      _
    // Predicated region
    $region42: #{tpu_custom_call.1} parent=1 // pred_check
      _
    $region43: #{tpu_custom_call.1} parent=1 // pred_check_branch
      %133 = sbr.rel (0) target = $region45
    $region44: #{tpu_custom_call.1} parent=1 // pred_region
      %135 = dma.done [#allocation6], 512
    $region45: #{tpu_custom_call.1} parent=1 // pred_fallthru
      _
    // Predicated region
    $region46: #{tpu_custom_call.1} parent=1 // pred_check
      _
    $region47: #{tpu_custom_call.1} parent=1 // pred_check_branch
      %137 = sbr.rel (0) target = $region49
    $region48: #{tpu_custom_call.1} parent=1 // pred_region
      %139 = dma.done [#allocation9], 512
    $region49: #{tpu_custom_call.1} parent=1 // pred_fallthru
      _
    // Predicated region
    $region50: #{tpu_custom_call.1} parent=1 // pred_check
      _
    $region51: #{tpu_custom_call.1} parent=1 // pred_check_branch
      %141 = sbr.rel (0) target = $region53
    $region52: #{tpu_custom_call.1} parent=1 // pred_region
      %143 = dma.done [#allocation9], 256
    $region53: #{tpu_custom_call.1} parent=1 // pred_fallthru
      _
    // Predicated region
    $region54: #{tpu_custom_call.1} parent=1 // pred_check
      _
    $region55: #{tpu_custom_call.1} parent=1 // pred_check_branch
      %145 = sbr.rel (0) target = $region57
    $region56: #{tpu_custom_call.1} parent=1 // pred_region
      %147 = dma.done [#allocation12], 128
    $region57: #{tpu_custom_call.1} parent=1 // pred_fallthru
      _
    // Predicated region
    $region58: #{tpu_custom_call.1} parent=1 // pred_check
      _
    $region59: #{tpu_custom_call.1} parent=1 // pred_check_branch
      %149 = sbr.rel (0) target = $region61
    $region60: #{tpu_custom_call.1} parent=1 // pred_region
      %151 = dma.done [#allocation12], 256
    $region61: #{tpu_custom_call.1} parent=1 // pred_fallthru
      _
    // Predicated region
    $region62: #{tpu_custom_call.1} parent=1 // pred_check
      _
    $region63: #{tpu_custom_call.1} parent=1 // pred_check_branch
      %153 = sbr.rel (0) target = $region65
    $region64: #{tpu_custom_call.1} parent=1 // pred_region
      %155 = dma.done [#allocation15], 512
    $region65: #{tpu_custom_call.1} parent=1 // pred_fallthru
      _
    %v156 = vld [vmem:[#allocation2] sm:$0xff]
    %v157 = vld [vmem:[#allocation2 + $0x8] sm:$0xff]
    %v158 = vld [vmem:[#allocation5] sm:$0xff]
    %v159 = vld [vmem:[#allocation5 + $0x8] sm:$0xff]
    %v160 = vld [vmem:[#allocation7] sm:$0xff]
    %v161 = vld [vmem:[#allocation7 + $0x8] sm:$0xff]
    %v162 = vld [vmem:[#allocation7 + $0x10] sm:$0xff]
    %v163 = vld [vmem:[#allocation7 + $0x18] sm:$0xff]
    %vm164 = vcmask 130048
    %v166 = vsel %vm164, %v156, 0
    %v169 = vsel %vm164, %v157, 0
    %171 = vmatpush.msra.mxu0 0.0
    %172 = vmatpush.msra.mxu0 0.0
    %173 = vmatpush.msra.mxu0 0.0
    %174 = vmatpush.msra.mxu0 0.0
    %175 = vmatpush.msra.mxu0 0.0
    %176 = vmatpush.msra.mxu0 0.0
    %177 = vmatpush.msra.mxu0 0.0
    %178 = vmatpush.msra.mxu0 0.0
    %179 = vmatpush.msra.mxu0 0.0
    %180 = vmatpush.msra.mxu0 0.0
    %181 = vmatpush.msra.mxu0 0.0
    %182 = vmatpush.msra.mxu0 0.0
    %183 = vmatpush.msra.mxu0 0.0
    %184 = vmatpush.msra.mxu0 0.0
    %185 = vmatpush.msra.mxu0 %v162
    %186 = vmatpush.msra.mxu0 %v160
    %187 = vmatmul.f32.gmra.mxu0 %v166
    %v188 = vpop.f32.mrf.mxu0
    %v189 = vadd.f32 0.0, %v188
    %190 = vmatmul.f32.gmra.mxu0 %v169
    %v191 = vpop.f32.mrf.mxu0
    %v192 = vadd.f32 0.0, %v191
    %193 = vdwg.mxu0
    %194 = vmatpush.msra.mxu0 0.0
    %195 = vmatpush.msra.mxu0 0.0
    %196 = vmatpush.msra.mxu0 0.0
    %197 = vmatpush.msra.mxu0 0.0
    %198 = vmatpush.msra.mxu0 0.0
    %199 = vmatpush.msra.mxu0 0.0
    %200 = vmatpush.msra.mxu0 0.0
    %201 = vmatpush.msra.mxu0 0.0
    %202 = vmatpush.msra.mxu0 0.0
    %203 = vmatpush.msra.mxu0 0.0
    %204 = vmatpush.msra.mxu0 0.0
    %205 = vmatpush.msra.mxu0 0.0
    %206 = vmatpush.msra.mxu0 0.0
    %207 = vmatpush.msra.mxu0 0.0
    %208 = vmatpush.msra.mxu0 %v163
    %209 = vmatpush.msra.mxu0 %v161
    %210 = vmatmul.f32.gmra.mxu0 %v166
    %v211 = vpop.f32.mrf.mxu0
    %v212 = vadd.f32 0.0, %v211
    %213 = vmatmul.f32.gmra.mxu0 %v169
    %v214 = vpop.f32.mrf.mxu0
    %v215 = vadd.f32 0.0, %v214
    %216 = vdwg.mxu0
    %v217 = vtanh.pop %v189
    %v218 = vtanh.pop %v212
    %v219 = vtanh.pop %v192
    %v220 = vtanh.pop %v215
    %v221 = vmul.f32 %v218, 0.17677669
    %v222 = vmul.f32 %v220, 0.17677669
    %v223 = vtanh.pop %v217
    %v224 = vtanh.pop %v219
    %vm225 = vcmask 261120
    %v227 = vsel %vm225, %v221, 0
    %v230 = vsel %vm225, %v222, 0
    %v233 = vsel %vm225, %v217, 0
    %v236 = vsel %vm225, %v219, 0
    %238 = vmatpush.xpose.msra.mxu0 0.0
    %239 = vmatpush.xpose.msra.mxu0 0.0
    %240 = vmatpush.xpose.msra.mxu0 0.0
    %241 = vmatpush.xpose.msra.mxu0 0.0
    %242 = vmatpush.xpose.msra.mxu0 0.0
    %243 = vmatpush.xpose.msra.mxu0 0.0
    %244 = vmatpush.xpose.msra.mxu0 0.0
    %245 = vmatpush.xpose.msra.mxu0 0.0
    %246 = vmatpush.xpose.msra.mxu0 0.0
    %247 = vmatpush.xpose.msra.mxu0 0.0
    %248 = vmatpush.xpose.msra.mxu0 0.0
    %249 = vmatpush.xpose.msra.mxu0 0.0
    %250 = vmatpush.xpose.msra.mxu0 0.0
    %251 = vmatpush.xpose.msra.mxu0 0.0
    %252 = vmatpush.xpose.msra.mxu0 %v236
    %253 = vmatpush.xpose.msra.mxu0 %v233
    %254 = vmatmul.f32.gmra.mxu0 %v227
    %v255 = vpop.f32.mrf.mxu0
    %v256 = vadd.f32 0.0, %v255
    %257 = vmatmul.f32.gmra.mxu0 %v230
    %v258 = vpop.f32.mrf.mxu0
    %v259 = vadd.f32 0.0, %v258
    %260 = vdwg.mxu0
    %v261 = vmul.f32 %v256, 1.442695
    %v262 = vpow.pop %v261
    %v263 = vmul.f32 %v259, 1.442695
    %v264 = vpow.pop %v263
    %v265 = vmul.f32 %v262, %v158
    %v266 = vmul.f32 %v264, %v159
    %v267 = vsel %vm164, %v265, 0.0
    %268 = vadd.xlane.f32.xlu0 %v267
    %v269 = vpop.xlane.xlu0 %268
    %v270 = vsel %vm164, %v266, 0.0
    %271 = vadd.xlane.f32.xlu0 %v270
    %v272 = vpop.xlane.xlu0 %271
    %v273 = vrcp.pop %v269
    %v274 = vmul.f32 %v269, %v273
    %v275 = vsub.f32 1.0, %v274
    %v276 = vmul.f32 %v273, %v275
    %v277 = vadd.f32 %v273, %v276
    %vm278 = vweird.f32 %v269
    %vm279 = vweird.f32 %v273
    %vm280 = vmor %vm278, %vm279
    %v281 = vsel %vm280, %v273, %v277
    %v282 = vand.u32 2147483647, %v269
    %vm283 = vcmp.eq.f32.partialorder %v282, 8.507059e+37
    %v284 = vand.u32 %v269, 2147483648
    %v285 = vor.u32 1.1754944e-38, %v284
    %v286 = vsel %vm283, %v285, %v281
    %v287 = vrcp.pop %v272
    %v288 = vmul.f32 %v272, %v287
    %v289 = vsub.f32 1.0, %v288
    %v290 = vmul.f32 %v287, %v289
    %v291 = vadd.f32 %v287, %v290
    %vm292 = vweird.f32 %v272
    %vm293 = vweird.f32 %v287
    %vm294 = vmor %vm292, %vm293
    %v295 = vsel %vm294, %v287, %v291
    %v296 = vand.u32 2147483647, %v272
    %vm297 = vcmp.eq.f32.partialorder %v296, 8.507059e+37
    %v298 = vand.u32 %v272, 2147483648
    %v299 = vor.u32 1.1754944e-38, %v298
    %v300 = vsel %vm297, %v299, %v295
    %v301 = vmul.f32 %v223, %v286
    %v302 = vmul.f32 %v224, %v300
    %303 = vrot.lane.b32.xlu0 %v221, 96
    %v304 = vpop.permute.xlu0 %303
    %305 = vrot.lane.b32.xlu0 %v222, 96
    %v306 = vpop.permute.xlu0 %305
    %307 = vrot.lane.b32.xlu0 %v217, 96
    %v308 = vpop.permute.xlu0 %307
    %309 = vrot.lane.b32.xlu0 %v219, 96
    %v310 = vpop.permute.xlu0 %309
    %v311 = vsel %vm225, %v304, 0
    %v313 = vsel %vm225, %v306, 0
    %v315 = vsel %vm225, %v308, 0
    %v317 = vsel %vm225, %v310, 0
    %319 = vmatpush.xpose.msra.mxu0 0.0
    %320 = vmatpush.xpose.msra.mxu0 0.0
    %321 = vmatpush.xpose.msra.mxu0 0.0
    %322 = vmatpush.xpose.msra.mxu0 0.0
    %323 = vmatpush.xpose.msra.mxu0 0.0
    %324 = vmatpush.xpose.msra.mxu0 0.0
    %325 = vmatpush.xpose.msra.mxu0 0.0
    %326 = vmatpush.xpose.msra.mxu0 0.0
    %327 = vmatpush.xpose.msra.mxu0 0.0
    %328 = vmatpush.xpose.msra.mxu0 0.0
    %329 = vmatpush.xpose.msra.mxu0 0.0
    %330 = vmatpush.xpose.msra.mxu0 0.0
    %331 = vmatpush.xpose.msra.mxu0 0.0
    %332 = vmatpush.xpose.msra.mxu0 0.0
    %333 = vmatpush.xpose.msra.mxu0 %v317
    %334 = vmatpush.xpose.msra.mxu0 %v315
    %335 = vmatmul.f32.gmra.mxu0 %v311
    %v336 = vpop.f32.mrf.mxu0
    %v337 = vadd.f32 0.0, %v336
    %338 = vmatmul.f32.gmra.mxu0 %v313
    %v339 = vpop.f32.mrf.mxu0
    %v340 = vadd.f32 0.0, %v339
    %341 = vdwg.mxu0
    %v342 = vmul.f32 %v337, 1.442695
    %v343 = vpow.pop %v342
    %v344 = vmul.f32 %v340, 1.442695
    %v345 = vpow.pop %v344
    %v346 = vmul.f32 %v343, %v158
    %v347 = vmul.f32 %v345, %v159
    %v348 = vsel %vm164, %v346, 0.0
    %349 = vadd.xlane.f32.xlu0 %v348
    %v350 = vpop.xlane.xlu0 %349
    %v351 = vsel %vm164, %v347, 0.0
    %352 = vadd.xlane.f32.xlu0 %v351
    %v353 = vpop.xlane.xlu0 %352
    %v354 = vrcp.pop %v350
    %v355 = vmul.f32 %v350, %v354
    %v356 = vsub.f32 1.0, %v355
    %v357 = vmul.f32 %v354, %v356
    %v358 = vadd.f32 %v354, %v357
    %vm359 = vweird.f32 %v350
    %vm360 = vweird.f32 %v354
    %vm361 = vmor %vm359, %vm360
    %v362 = vsel %vm361, %v354, %v358
    %v363 = vand.u32 2147483647, %v350
    %vm364 = vcmp.eq.f32.partialorder %v363, 8.507059e+37
    %v365 = vand.u32 %v350, 2147483648
    %v366 = vor.u32 1.1754944e-38, %v365
    %v367 = vsel %vm364, %v366, %v362
    %v368 = vrcp.pop %v353
    %v369 = vmul.f32 %v353, %v368
    %v370 = vsub.f32 1.0, %v369
    %v371 = vmul.f32 %v368, %v370
    %v372 = vadd.f32 %v368, %v371
    %vm373 = vweird.f32 %v353
    %vm374 = vweird.f32 %v368
    %vm375 = vmor %vm373, %vm374
    %v376 = vsel %vm375, %v368, %v372
    %v377 = vand.u32 2147483647, %v353
    %vm378 = vcmp.eq.f32.partialorder %v377, 8.507059e+37
    %v379 = vand.u32 %v353, 2147483648
    %v380 = vor.u32 1.1754944e-38, %v379
    %v381 = vsel %vm378, %v380, %v376
    %v382 = vmul.f32 %v223, %v367
    %v383 = vmul.f32 %v224, %v381
    %386 = vrot.lane.b32.xlu0 %v382, 96
    %v387 = vpop.permute.xlu0 %386
    %388 = vrot.lane.b32.xlu0 %v383, 96
    %v389 = vpop.permute.xlu0 %388
    %v393 = vsel %vm164, %v346, 0
    %v396 = vsel %vm164, %v347, 0
    %398 = vmatpush.msra.mxu0 0.0
    %399 = vmatpush.msra.mxu0 0.0
    %400 = vmatpush.msra.mxu0 0.0
    %401 = vmatpush.msra.mxu0 0.0
    %402 = vmatpush.msra.mxu0 0.0
    %403 = vmatpush.msra.mxu0 0.0
    %404 = vmatpush.msra.mxu0 0.0
    %405 = vmatpush.msra.mxu0 0.0
    %406 = vmatpush.msra.mxu0 0.0
    %407 = vmatpush.msra.mxu0 0.0
    %408 = vmatpush.msra.mxu0 0.0
    %409 = vmatpush.msra.mxu0 0.0
    %410 = vmatpush.msra.mxu0 0.0
    %411 = vmatpush.msra.mxu0 0.0
    %412 = vmatpush.msra.mxu0 %v389
    %413 = vmatpush.msra.mxu0 %v387
    %414 = vmatmul.f32.gmra.mxu0 %v393
    %v415 = vpop.f32.mrf.mxu0
    %v416 = vadd.f32 0.0, %v415
    %417 = vmatmul.f32.gmra.mxu0 %v396
    %v418 = vpop.f32.mrf.mxu0
    %v419 = vadd.f32 0.0, %v418
    %420 = vdwg.mxu0
    %v422 = vsel %vm164, %v265, 0
    %v425 = vsel %vm164, %v266, 0
    %427 = vmatpush.msra.mxu0 0.0
    %428 = vmatpush.msra.mxu0 0.0
    %429 = vmatpush.msra.mxu0 0.0
    %430 = vmatpush.msra.mxu0 0.0
    %431 = vmatpush.msra.mxu0 0.0
    %432 = vmatpush.msra.mxu0 0.0
    %433 = vmatpush.msra.mxu0 0.0
    %434 = vmatpush.msra.mxu0 0.0
    %435 = vmatpush.msra.mxu0 0.0
    %436 = vmatpush.msra.mxu0 0.0
    %437 = vmatpush.msra.mxu0 0.0
    %438 = vmatpush.msra.mxu0 0.0
    %439 = vmatpush.msra.mxu0 0.0
    %440 = vmatpush.msra.mxu0 0.0
    %441 = vmatpush.msra.mxu0 %v302
    %442 = vmatpush.msra.mxu0 %v301
    %443 = vmatmul.f32.gmra.mxu0 %v422
    %v444 = vpop.f32.mrf.mxu0
    %v445 = vadd.f32 %v416, %v444
    %446 = vmatmul.f32.gmra.mxu0 %v425
    %v447 = vpop.f32.mrf.mxu0
    %v448 = vadd.f32 %v419, %v447
    %449 = vdwg.mxu0
    %450 = vrot.lane.b32.xlu0 %v221, 64
    %v451 = vpop.permute.xlu0 %450
    %452 = vrot.lane.b32.xlu0 %v222, 64
    %v453 = vpop.permute.xlu0 %452
    %454 = vrot.lane.b32.xlu0 %v217, 64
    %v455 = vpop.permute.xlu0 %454
    %456 = vrot.lane.b32.xlu0 %v219, 64
    %v457 = vpop.permute.xlu0 %456
    %v458 = vsel %vm225, %v451, 0
    %v460 = vsel %vm225, %v453, 0
    %v462 = vsel %vm225, %v455, 0
    %v464 = vsel %vm225, %v457, 0
    %466 = vmatpush.xpose.msra.mxu0 0.0
    %467 = vmatpush.xpose.msra.mxu0 0.0
    %468 = vmatpush.xpose.msra.mxu0 0.0
    %469 = vmatpush.xpose.msra.mxu0 0.0
    %470 = vmatpush.xpose.msra.mxu0 0.0
    %471 = vmatpush.xpose.msra.mxu0 0.0
    %472 = vmatpush.xpose.msra.mxu0 0.0
    %473 = vmatpush.xpose.msra.mxu0 0.0
    %474 = vmatpush.xpose.msra.mxu0 0.0
    %475 = vmatpush.xpose.msra.mxu0 0.0
    %476 = vmatpush.xpose.msra.mxu0 0.0
    %477 = vmatpush.xpose.msra.mxu0 0.0
    %478 = vmatpush.xpose.msra.mxu0 0.0
    %479 = vmatpush.xpose.msra.mxu0 0.0
    %480 = vmatpush.xpose.msra.mxu0 %v464
    %481 = vmatpush.xpose.msra.mxu0 %v462
    %482 = vmatmul.f32.gmra.mxu0 %v458
    %v483 = vpop.f32.mrf.mxu0
    %v484 = vadd.f32 0.0, %v483
    %485 = vmatmul.f32.gmra.mxu0 %v460
    %v486 = vpop.f32.mrf.mxu0
    %v487 = vadd.f32 0.0, %v486
    %488 = vdwg.mxu0
    %v489 = vmul.f32 %v484, 1.442695
    %v490 = vpow.pop %v489
    %v491 = vmul.f32 %v487, 1.442695
    %v492 = vpow.pop %v491
    %v493 = vmul.f32 %v490, %v158
    %v494 = vmul.f32 %v492, %v159
    %v495 = vsel %vm164, %v493, 0.0
    %496 = vadd.xlane.f32.xlu0 %v495
    %v497 = vpop.xlane.xlu0 %496
    %v498 = vsel %vm164, %v494, 0.0
    %499 = vadd.xlane.f32.xlu0 %v498
    %v500 = vpop.xlane.xlu0 %499
    %v501 = vrcp.pop %v497
    %v502 = vmul.f32 %v497, %v501
    %v503 = vsub.f32 1.0, %v502
    %v504 = vmul.f32 %v501, %v503
    %v505 = vadd.f32 %v501, %v504
    %vm506 = vweird.f32 %v497
    %vm507 = vweird.f32 %v501
    %vm508 = vmor %vm506, %vm507
    %v509 = vsel %vm508, %v501, %v505
    %v510 = vand.u32 2147483647, %v497
    %vm511 = vcmp.eq.f32.partialorder %v510, 8.507059e+37
    %v512 = vand.u32 %v497, 2147483648
    %v513 = vor.u32 1.1754944e-38, %v512
    %v514 = vsel %vm511, %v513, %v509
    %v515 = vrcp.pop %v500
    %v516 = vmul.f32 %v500, %v515
    %v517 = vsub.f32 1.0, %v516
    %v518 = vmul.f32 %v515, %v517
    %v519 = vadd.f32 %v515, %v518
    %vm520 = vweird.f32 %v500
    %vm521 = vweird.f32 %v515
    %vm522 = vmor %vm520, %vm521
    %v523 = vsel %vm522, %v515, %v519
    %v524 = vand.u32 2147483647, %v500
    %vm525 = vcmp.eq.f32.partialorder %v524, 8.507059e+37
    %v526 = vand.u32 %v500, 2147483648
    %v527 = vor.u32 1.1754944e-38, %v526
    %v528 = vsel %vm525, %v527, %v523
    %v529 = vmul.f32 %v223, %v514
    %v530 = vmul.f32 %v224, %v528
    %533 = vrot.lane.b32.xlu0 %v529, 64
    %v534 = vpop.permute.xlu0 %533
    %535 = vrot.lane.b32.xlu0 %v530, 64
    %v536 = vpop.permute.xlu0 %535
    %v540 = vsel %vm164, %v493, 0
    %v543 = vsel %vm164, %v494, 0
    %545 = vmatpush.msra.mxu0 0.0
    %546 = vmatpush.msra.mxu0 0.0
    %547 = vmatpush.msra.mxu0 0.0
    %548 = vmatpush.msra.mxu0 0.0
    %549 = vmatpush.msra.mxu0 0.0
    %550 = vmatpush.msra.mxu0 0.0
    %551 = vmatpush.msra.mxu0 0.0
    %552 = vmatpush.msra.mxu0 0.0
    %553 = vmatpush.msra.mxu0 0.0
    %554 = vmatpush.msra.mxu0 0.0
    %555 = vmatpush.msra.mxu0 0.0
    %556 = vmatpush.msra.mxu0 0.0
    %557 = vmatpush.msra.mxu0 0.0
    %558 = vmatpush.msra.mxu0 0.0
    %559 = vmatpush.msra.mxu0 %v536
    %560 = vmatpush.msra.mxu0 %v534
    %561 = vmatmul.f32.gmra.mxu0 %v540
    %v562 = vpop.f32.mrf.mxu0
    %v563 = vadd.f32 0.0, %v562
    %564 = vmatmul.f32.gmra.mxu0 %v543
    %v565 = vpop.f32.mrf.mxu0
    %v566 = vadd.f32 0.0, %v565
    %567 = vdwg.mxu0
    %v568 = vadd.f32 %v445, %v563
    %v569 = vadd.f32 %v448, %v566
    %570 = vrot.lane.b32.xlu0 %v221, 32
    %v571 = vpop.permute.xlu0 %570
    %572 = vrot.lane.b32.xlu0 %v222, 32
    %v573 = vpop.permute.xlu0 %572
    %574 = vrot.lane.b32.xlu0 %v217, 32
    %v575 = vpop.permute.xlu0 %574
    %576 = vrot.lane.b32.xlu0 %v219, 32
    %v577 = vpop.permute.xlu0 %576
    %v578 = vsel %vm225, %v571, 0
    %v580 = vsel %vm225, %v573, 0
    %v582 = vsel %vm225, %v575, 0
    %v584 = vsel %vm225, %v577, 0
    %586 = vmatpush.xpose.msra.mxu0 0.0
    %587 = vmatpush.xpose.msra.mxu0 0.0
    %588 = vmatpush.xpose.msra.mxu0 0.0
    %589 = vmatpush.xpose.msra.mxu0 0.0
    %590 = vmatpush.xpose.msra.mxu0 0.0
    %591 = vmatpush.xpose.msra.mxu0 0.0
    %592 = vmatpush.xpose.msra.mxu0 0.0
    %593 = vmatpush.xpose.msra.mxu0 0.0
    %594 = vmatpush.xpose.msra.mxu0 0.0
    %595 = vmatpush.xpose.msra.mxu0 0.0
    %596 = vmatpush.xpose.msra.mxu0 0.0
    %597 = vmatpush.xpose.msra.mxu0 0.0
    %598 = vmatpush.xpose.msra.mxu0 0.0
    %599 = vmatpush.xpose.msra.mxu0 0.0
    %600 = vmatpush.xpose.msra.mxu0 %v584
    %601 = vmatpush.xpose.msra.mxu0 %v582
    %602 = vmatmul.f32.gmra.mxu0 %v578
    %v603 = vpop.f32.mrf.mxu0
    %v604 = vadd.f32 0.0, %v603
    %605 = vmatmul.f32.gmra.mxu0 %v580
    %v606 = vpop.f32.mrf.mxu0
    %v607 = vadd.f32 0.0, %v606
    %608 = vdwg.mxu0
    %v609 = vmul.f32 %v604, 1.442695
    %v610 = vpow.pop %v609
    %v611 = vmul.f32 %v607, 1.442695
    %v612 = vpow.pop %v611
    %v613 = vmul.f32 %v610, %v158
    %v614 = vmul.f32 %v612, %v159
    %v615 = vsel %vm164, %v613, 0.0
    %616 = vadd.xlane.f32.xlu0 %v615
    %v617 = vpop.xlane.xlu0 %616
    %v618 = vsel %vm164, %v614, 0.0
    %619 = vadd.xlane.f32.xlu0 %v618
    %v620 = vpop.xlane.xlu0 %619
    %v621 = vrcp.pop %v617
    %v622 = vmul.f32 %v617, %v621
    %v623 = vsub.f32 1.0, %v622
    %v624 = vmul.f32 %v621, %v623
    %v625 = vadd.f32 %v621, %v624
    %vm626 = vweird.f32 %v617
    %vm627 = vweird.f32 %v621
    %vm628 = vmor %vm626, %vm627
    %v629 = vsel %vm628, %v621, %v625
    %v630 = vand.u32 2147483647, %v617
    %vm631 = vcmp.eq.f32.partialorder %v630, 8.507059e+37
    %v632 = vand.u32 %v617, 2147483648
    %v633 = vor.u32 1.1754944e-38, %v632
    %v634 = vsel %vm631, %v633, %v629
    %v635 = vrcp.pop %v620
    %v636 = vmul.f32 %v620, %v635
    %v637 = vsub.f32 1.0, %v636
    %v638 = vmul.f32 %v635, %v637
    %v639 = vadd.f32 %v635, %v638
    %vm640 = vweird.f32 %v620
    %vm641 = vweird.f32 %v635
    %vm642 = vmor %vm640, %vm641
    %v643 = vsel %vm642, %v635, %v639
    %v644 = vand.u32 2147483647, %v620
    %vm645 = vcmp.eq.f32.partialorder %v644, 8.507059e+37
    %v646 = vand.u32 %v620, 2147483648
    %v647 = vor.u32 1.1754944e-38, %v646
    %v648 = vsel %vm645, %v647, %v643
    %v649 = vmul.f32 %v223, %v634
    %v650 = vmul.f32 %v224, %v648
    %653 = vrot.lane.b32.xlu0 %v649, 32
    %v654 = vpop.permute.xlu0 %653
    %655 = vrot.lane.b32.xlu0 %v650, 32
    %v656 = vpop.permute.xlu0 %655
    %v660 = vsel %vm164, %v613, 0
    %v663 = vsel %vm164, %v614, 0
    %665 = vmatpush.msra.mxu0 0.0
    %666 = vmatpush.msra.mxu0 0.0
    %667 = vmatpush.msra.mxu0 0.0
    %668 = vmatpush.msra.mxu0 0.0
    %669 = vmatpush.msra.mxu0 0.0
    %670 = vmatpush.msra.mxu0 0.0
    %671 = vmatpush.msra.mxu0 0.0
    %672 = vmatpush.msra.mxu0 0.0
    %673 = vmatpush.msra.mxu0 0.0
    %674 = vmatpush.msra.mxu0 0.0
    %675 = vmatpush.msra.mxu0 0.0
    %676 = vmatpush.msra.mxu0 0.0
    %677 = vmatpush.msra.mxu0 0.0
    %678 = vmatpush.msra.mxu0 0.0
    %679 = vmatpush.msra.mxu0 %v656
    %680 = vmatpush.msra.mxu0 %v654
    %681 = vmatmul.f32.gmra.mxu0 %v660
    %v682 = vpop.f32.mrf.mxu0
    %v683 = vadd.f32 0.0, %v682
    %684 = vmatmul.f32.gmra.mxu0 %v663
    %v685 = vpop.f32.mrf.mxu0
    %v686 = vadd.f32 0.0, %v685
    %687 = vdwg.mxu0
    %v688 = vadd.f32 %v568, %v683
    %v689 = vadd.f32 %v569, %v686
    %v691 = vsel %vm164, %v158, 0
    %v694 = vsel %vm164, %v159, 0
    %696 = vmatpush.msra.mxu0 0.0
    %697 = vmatpush.msra.mxu0 0.0
    %698 = vmatpush.msra.mxu0 0.0
    %699 = vmatpush.msra.mxu0 0.0
    %700 = vmatpush.msra.mxu0 0.0
    %701 = vmatpush.msra.mxu0 0.0
    %702 = vmatpush.msra.mxu0 0.0
    %703 = vmatpush.msra.mxu0 0.0
    %704 = vmatpush.msra.mxu0 0.0
    %705 = vmatpush.msra.mxu0 0.0
    %706 = vmatpush.msra.mxu0 0.0
    %707 = vmatpush.msra.mxu0 0.0
    %708 = vmatpush.msra.mxu0 0.0
    %709 = vmatpush.msra.mxu0 0.0
    %710 = vmatpush.msra.mxu0 %v689
    %711 = vmatpush.msra.mxu0 %v688
    %712 = vmatmul.f32.gmra.mxu0 %v691
    %v713 = vpop.f32.mrf.mxu0
    %v714 = vadd.f32 0.0, %v713
    %715 = vmatmul.f32.gmra.mxu0 %v694
    %v716 = vpop.f32.mrf.mxu0
    %v717 = vadd.f32 0.0, %v716
    %718 = vdwg.mxu0
    %v719 = vmul.f32 %v714, 0.25
    %v720 = vmul.f32 %v717, 0.25
    %v721 = vld [vmem:[#allocation8] sm:$0xff]
    %v722 = vld [vmem:[#allocation8 + $0x8] sm:$0xff]
    %v723 = vld [vmem:[#allocation8 + $0x10] sm:$0xff]
    %v724 = vld [vmem:[#allocation8 + $0x18] sm:$0xff]
    %v726 = vsel %vm225, %v719, 0
    %v729 = vsel %vm225, %v720, 0
    %731 = vmatpush.msra.mxu0 0.0
    %732 = vmatpush.msra.mxu0 0.0
    %733 = vmatpush.msra.mxu0 0.0
    %734 = vmatpush.msra.mxu0 0.0
    %735 = vmatpush.msra.mxu0 0.0
    %736 = vmatpush.msra.mxu0 0.0
    %737 = vmatpush.msra.mxu0 0.0
    %738 = vmatpush.msra.mxu0 0.0
    %739 = vmatpush.msra.mxu0 0.0
    %740 = vmatpush.msra.mxu0 0.0
    %741 = vmatpush.msra.mxu0 0.0
    %742 = vmatpush.msra.mxu0 0.0
    %743 = vmatpush.msra.mxu0 %v724
    %744 = vmatpush.msra.mxu0 %v723
    %745 = vmatpush.msra.mxu0 %v722
    %746 = vmatpush.msra.mxu0 %v721
    %747 = vmatmul.f32.gmra.mxu0 %v726
    %v748 = vpop.f32.mrf.mxu0
    %v749 = vadd.f32 0.0, %v748
    %750 = vmatmul.f32.gmra.mxu0 %v729
    %v751 = vpop.f32.mrf.mxu0
    %v752 = vadd.f32 0.0, %v751
    %753 = vdwg.mxu0
    %v754 = vtanh.pop %v749
    %v755 = vtanh.pop %v752
    %v756 = vmul.f32 %v754, 0.25
    %v757 = vmul.f32 %v755, 0.25
    %v758 = vtanh.pop %v754
    %v759 = vtanh.pop %v755
    %762 = vrot.lane.b32.xlu0 %v756, 112
    %v763 = vpop.permute.xlu0 %762
    %764 = vrot.lane.b32.xlu0 %v757, 112
    %v765 = vpop.permute.xlu0 %764
    %v766 = vsel %vm164, %v763, 0
    %v768 = vsel %vm164, %v765, 0
    %v771 = vsel %vm164, %v754, 0
    %v774 = vsel %vm164, %v755, 0
    %776 = vmatpush.xpose.msra.mxu0 0.0
    %777 = vmatpush.xpose.msra.mxu0 0.0
    %778 = vmatpush.xpose.msra.mxu0 0.0
    %779 = vmatpush.xpose.msra.mxu0 0.0
    %780 = vmatpush.xpose.msra.mxu0 0.0
    %781 = vmatpush.xpose.msra.mxu0 0.0
    %782 = vmatpush.xpose.msra.mxu0 0.0
    %783 = vmatpush.xpose.msra.mxu0 0.0
    %784 = vmatpush.xpose.msra.mxu0 0.0
    %785 = vmatpush.xpose.msra.mxu0 0.0
    %786 = vmatpush.xpose.msra.mxu0 0.0
    %787 = vmatpush.xpose.msra.mxu0 0.0
    %788 = vmatpush.xpose.msra.mxu0 0.0
    %789 = vmatpush.xpose.msra.mxu0 0.0
    %790 = vmatpush.xpose.msra.mxu0 %v774
    %791 = vmatpush.xpose.msra.mxu0 %v771
    %792 = vmatmul.f32.gmra.mxu0 %v766
    %v793 = vpop.f32.mrf.mxu0
    %v794 = vadd.f32 0.0, %v793
    %795 = vmatmul.f32.gmra.mxu0 %v768
    %v796 = vpop.f32.mrf.mxu0
    %v797 = vadd.f32 0.0, %v796
    %798 = vdwg.mxu0
    %v799 = vmul.f32 %v794, 1.442695
    %v800 = vpow.pop %v799
    %v801 = vmul.f32 %v797, 1.442695
    %v802 = vpow.pop %v801
    %v803 = vmul.f32 %v800, %v158
    %v804 = vmul.f32 %v802, %v159
    %v805 = vsel %vm164, %v803, 0.0
    %806 = vadd.xlane.f32.xlu0 %v805
    %v807 = vpop.xlane.xlu0 %806
    %v808 = vsel %vm164, %v804, 0.0
    %809 = vadd.xlane.f32.xlu0 %v808
    %v810 = vpop.xlane.xlu0 %809
    %v811 = vrcp.pop %v807
    %v812 = vmul.f32 %v807, %v811
    %v813 = vsub.f32 1.0, %v812
    %v814 = vmul.f32 %v811, %v813
    %v815 = vadd.f32 %v811, %v814
    %vm816 = vweird.f32 %v807
    %vm817 = vweird.f32 %v811
    %vm818 = vmor %vm816, %vm817
    %v819 = vsel %vm818, %v811, %v815
    %v820 = vand.u32 2147483647, %v807
    %vm821 = vcmp.eq.f32.partialorder %v820, 8.507059e+37
    %v822 = vand.u32 %v807, 2147483648
    %v823 = vor.u32 1.1754944e-38, %v822
    %v824 = vsel %vm821, %v823, %v819
    %v825 = vrcp.pop %v810
    %v826 = vmul.f32 %v810, %v825
    %v827 = vsub.f32 1.0, %v826
    %v828 = vmul.f32 %v825, %v827
    %v829 = vadd.f32 %v825, %v828
    %vm830 = vweird.f32 %v810
    %vm831 = vweird.f32 %v825
    %vm832 = vmor %vm830, %vm831
    %v833 = vsel %vm832, %v825, %v829
    %v834 = vand.u32 2147483647, %v810
    %vm835 = vcmp.eq.f32.partialorder %v834, 8.507059e+37
    %v836 = vand.u32 %v810, 2147483648
    %v837 = vor.u32 1.1754944e-38, %v836
    %v838 = vsel %vm835, %v837, %v833
    %v839 = vmul.f32 %v758, %v824
    %v840 = vmul.f32 %v759, %v838
    %v842 = vsel %vm164, %v803, 0
    %v845 = vsel %vm164, %v804, 0
    %847 = vmatpush.msra.mxu0 0.0
    %848 = vmatpush.msra.mxu0 0.0
    %849 = vmatpush.msra.mxu0 0.0
    %850 = vmatpush.msra.mxu0 0.0
    %851 = vmatpush.msra.mxu0 0.0
    %852 = vmatpush.msra.mxu0 0.0
    %853 = vmatpush.msra.mxu0 0.0
    %854 = vmatpush.msra.mxu0 0.0
    %855 = vmatpush.msra.mxu0 0.0
    %856 = vmatpush.msra.mxu0 0.0
    %857 = vmatpush.msra.mxu0 0.0
    %858 = vmatpush.msra.mxu0 0.0
    %859 = vmatpush.msra.mxu0 0.0
    %860 = vmatpush.msra.mxu0 0.0
    %861 = vmatpush.msra.mxu0 %v840
    %862 = vmatpush.msra.mxu0 %v839
    %863 = vmatmul.f32.gmra.mxu0 %v842
    %v864 = vpop.f32.mrf.mxu0
    %v865 = vadd.f32 0.0, %v864
    %866 = vmatmul.f32.gmra.mxu0 %v845
    %v867 = vpop.f32.mrf.mxu0
    %v868 = vadd.f32 0.0, %v867
    %869 = vdwg.mxu0
    %870 = vmatpush.msra.mxu0 0.0
    %871 = vmatpush.msra.mxu0 0.0
    %872 = vmatpush.msra.mxu0 0.0
    %873 = vmatpush.msra.mxu0 0.0
    %874 = vmatpush.msra.mxu0 0.0
    %875 = vmatpush.msra.mxu0 0.0
    %876 = vmatpush.msra.mxu0 0.0
    %877 = vmatpush.msra.mxu0 0.0
    %878 = vmatpush.msra.mxu0 0.0
    %879 = vmatpush.msra.mxu0 0.0
    %880 = vmatpush.msra.mxu0 0.0
    %881 = vmatpush.msra.mxu0 0.0
    %882 = vmatpush.msra.mxu0 0.0
    %883 = vmatpush.msra.mxu0 0.0
    %884 = vmatpush.msra.mxu0 %v868
    %885 = vmatpush.msra.mxu0 %v865
    %886 = vmatmul.f32.gmra.mxu0 %v691
    %v887 = vpop.f32.mrf.mxu0
    %v888 = vadd.f32 0.0, %v887
    %889 = vmatmul.f32.gmra.mxu0 %v694
    %v890 = vpop.f32.mrf.mxu0
    %v891 = vadd.f32 0.0, %v890
    %892 = vdwg.mxu0
    %v893 = vld [vmem:[#allocation10] sm:$0xff]
    %v894 = vld [vmem:[#allocation10 + $0x8] sm:$0xff]
    %v896 = vsel %vm164, %v888, 0
    %v899 = vsel %vm164, %v891, 0
    %901 = vmatpush.msra.mxu0 0.0
    %902 = vmatpush.msra.mxu0 0.0
    %903 = vmatpush.msra.mxu0 0.0
    %904 = vmatpush.msra.mxu0 0.0
    %905 = vmatpush.msra.mxu0 0.0
    %906 = vmatpush.msra.mxu0 0.0
    %907 = vmatpush.msra.mxu0 0.0
    %908 = vmatpush.msra.mxu0 0.0
    %909 = vmatpush.msra.mxu0 0.0
    %910 = vmatpush.msra.mxu0 0.0
    %911 = vmatpush.msra.mxu0 0.0
    %912 = vmatpush.msra.mxu0 0.0
    %913 = vmatpush.msra.mxu0 0.0
    %914 = vmatpush.msra.mxu0 0.0
    %915 = vmatpush.msra.mxu0 %v894
    %916 = vmatpush.msra.mxu0 %v893
    %917 = vmatmul.f32.gmra.mxu0 %v896
    %v918 = vpop.f32.mrf.mxu0
    %v919 = vadd.f32 0.0, %v918
    %920 = vmatmul.f32.gmra.mxu0 %v899
    %v921 = vpop.f32.mrf.mxu0
    %v922 = vadd.f32 0.0, %v921
    %923 = vdwg.mxu0
    %v924 = vtanh.pop %v919
    %v925 = vtanh.pop %v922
    %v926 = vmul.f32 %v924, 0.35355338
    %v927 = vmul.f32 %v925, 0.35355338
    %930 = vrot.lane.b32.xlu0 %v926, 120
    %v931 = vpop.permute.xlu0 %930
    %932 = vrot.lane.b32.xlu0 %v927, 120
    %v933 = vpop.permute.xlu0 %932
    %vm934 = vcmask 64512
    %v935 = vsel %vm934, %v931, 0
    %v937 = vsel %vm934, %v933, 0
    %v940 = vsel %vm934, %v924, 0
    %v943 = vsel %vm934, %v925, 0
    %945 = vmatpush.xpose.msra.mxu0 0.0
    %946 = vmatpush.xpose.msra.mxu0 0.0
    %947 = vmatpush.xpose.msra.mxu0 0.0
    %948 = vmatpush.xpose.msra.mxu0 0.0
    %949 = vmatpush.xpose.msra.mxu0 0.0
    %950 = vmatpush.xpose.msra.mxu0 0.0
    %951 = vmatpush.xpose.msra.mxu0 0.0
    %952 = vmatpush.xpose.msra.mxu0 0.0
    %953 = vmatpush.xpose.msra.mxu0 0.0
    %954 = vmatpush.xpose.msra.mxu0 0.0
    %955 = vmatpush.xpose.msra.mxu0 0.0
    %956 = vmatpush.xpose.msra.mxu0 0.0
    %957 = vmatpush.xpose.msra.mxu0 0.0
    %958 = vmatpush.xpose.msra.mxu0 0.0
    %959 = vmatpush.xpose.msra.mxu0 %v943
    %960 = vmatpush.xpose.msra.mxu0 %v940
    %961 = vmatmul.f32.gmra.mxu0 %v935
    %v962 = vpop.f32.mrf.mxu0
    %v963 = vadd.f32 0.0, %v962
    %964 = vmatmul.f32.gmra.mxu0 %v937
    %v965 = vpop.f32.mrf.mxu0
    %v966 = vadd.f32 0.0, %v965
    %967 = vdwg.mxu0
    %v968 = vmul.f32 %v963, 1.442695
    %v969 = vpow.pop %v968
    %v970 = vmul.f32 %v966, 1.442695
    %v971 = vpow.pop %v970
    %v972 = vmul.f32 %v969, %v158
    %v973 = vmul.f32 %v971, %v159
    %v974 = vsel %vm164, %v972, 0.0
    %975 = vadd.xlane.f32.xlu0 %v974
    %v976 = vpop.xlane.xlu0 %975
    %v977 = vsel %vm164, %v973, 0.0
    %978 = vadd.xlane.f32.xlu0 %v977
    %v979 = vpop.xlane.xlu0 %978
    %v980 = vrcp.pop %v976
    %v981 = vmul.f32 %v976, %v980
    %v982 = vsub.f32 1.0, %v981
    %v983 = vmul.f32 %v980, %v982
    %v984 = vadd.f32 %v980, %v983
    %vm985 = vweird.f32 %v976
    %vm986 = vweird.f32 %v980
    %vm987 = vmor %vm985, %vm986
    %v988 = vsel %vm987, %v980, %v984
    %v989 = vand.u32 2147483647, %v976
    %vm990 = vcmp.eq.f32.partialorder %v989, 8.507059e+37
    %v991 = vand.u32 %v976, 2147483648
    %v992 = vor.u32 1.1754944e-38, %v991
    %v993 = vsel %vm990, %v992, %v988
    %v994 = vrcp.pop %v979
    %v995 = vmul.f32 %v979, %v994
    %v996 = vsub.f32 1.0, %v995
    %v997 = vmul.f32 %v994, %v996
    %v998 = vadd.f32 %v994, %v997
    %vm999 = vweird.f32 %v979
    %vm1000 = vweird.f32 %v994
    %vm1001 = vmor %vm999, %vm1000
    %v1002 = vsel %vm1001, %v994, %v998
    %v1003 = vand.u32 2147483647, %v979
    %vm1004 = vcmp.eq.f32.partialorder %v1003, 8.507059e+37
    %v1005 = vand.u32 %v979, 2147483648
    %v1006 = vor.u32 1.1754944e-38, %v1005
    %v1007 = vsel %vm1004, %v1006, %v1002
    %v1008 = vmul.f32 %v924, %v993
    %v1009 = vmul.f32 %v925, %v1007
    %v1011 = vsel %vm164, %v972, 0
    %v1014 = vsel %vm164, %v973, 0
    %1016 = vmatpush.msra.mxu0 0.0
    %1017 = vmatpush.msra.mxu0 0.0
    %1018 = vmatpush.msra.mxu0 0.0
    %1019 = vmatpush.msra.mxu0 0.0
    %1020 = vmatpush.msra.mxu0 0.0
    %1021 = vmatpush.msra.mxu0 0.0
    %1022 = vmatpush.msra.mxu0 0.0
    %1023 = vmatpush.msra.mxu0 0.0
    %1024 = vmatpush.msra.mxu0 0.0
    %1025 = vmatpush.msra.mxu0 0.0
    %1026 = vmatpush.msra.mxu0 0.0
    %1027 = vmatpush.msra.mxu0 0.0
    %1028 = vmatpush.msra.mxu0 0.0
    %1029 = vmatpush.msra.mxu0 0.0
    %1030 = vmatpush.msra.mxu0 %v1009
    %1031 = vmatpush.msra.mxu0 %v1008
    %1032 = vmatmul.f32.gmra.mxu0 %v1011
    %v1033 = vpop.f32.mrf.mxu0
    %v1034 = vadd.f32 0.0, %v1033
    %1035 = vmatmul.f32.gmra.mxu0 %v1014
    %v1036 = vpop.f32.mrf.mxu0
    %v1037 = vadd.f32 0.0, %v1036
    %1038 = vdwg.mxu0
    %1039 = vmatpush.msra.mxu0 0.0
    %1040 = vmatpush.msra.mxu0 0.0
    %1041 = vmatpush.msra.mxu0 0.0
    %1042 = vmatpush.msra.mxu0 0.0
    %1043 = vmatpush.msra.mxu0 0.0
    %1044 = vmatpush.msra.mxu0 0.0
    %1045 = vmatpush.msra.mxu0 0.0
    %1046 = vmatpush.msra.mxu0 0.0
    %1047 = vmatpush.msra.mxu0 0.0
    %1048 = vmatpush.msra.mxu0 0.0
    %1049 = vmatpush.msra.mxu0 0.0
    %1050 = vmatpush.msra.mxu0 0.0
    %1051 = vmatpush.msra.mxu0 0.0
    %1052 = vmatpush.msra.mxu0 0.0
    %1053 = vmatpush.msra.mxu0 %v1037
    %1054 = vmatpush.msra.mxu0 %v1034
    %1055 = vmatmul.f32.gmra.mxu0 %v691
    %v1056 = vpop.f32.mrf.mxu0
    %v1057 = vadd.f32 0.0, %v1056
    %1058 = vmatmul.f32.gmra.mxu0 %v694
    %v1059 = vpop.f32.mrf.mxu0
    %v1060 = vadd.f32 0.0, %v1059
    %1061 = vdwg.mxu0
    %v1063 = vsel %vm934, %v1057, 0
    %v1066 = vsel %vm934, %v1060, 0
    %1068 = vmatpush.xpose.msra.mxu0 0.0
    %1069 = vmatpush.xpose.msra.mxu0 0.0
    %1070 = vmatpush.xpose.msra.mxu0 0.0
    %1071 = vmatpush.xpose.msra.mxu0 0.0
    %1072 = vmatpush.xpose.msra.mxu0 0.0
    %1073 = vmatpush.xpose.msra.mxu0 0.0
    %1074 = vmatpush.xpose.msra.mxu0 0.0
    %1075 = vmatpush.xpose.msra.mxu0 0.0
    %1076 = vmatpush.xpose.msra.mxu0 0.0
    %1077 = vmatpush.xpose.msra.mxu0 0.0
    %1078 = vmatpush.xpose.msra.mxu0 0.0
    %1079 = vmatpush.xpose.msra.mxu0 0.0
    %1080 = vmatpush.xpose.msra.mxu0 0.0
    %1081 = vmatpush.xpose.msra.mxu0 0.0
    %1082 = vmatpush.xpose.msra.mxu0 %v1066
    %1083 = vmatpush.xpose.msra.mxu0 %v1063
    %1084 = vmatmul.f32.gmra.mxu0 %v1063
    %v1085 = vpop.f32.mrf.mxu0
    %v1086 = vadd.f32 0.0, %v1085
    %1087 = vmatmul.f32.gmra.mxu0 %v1066
    %v1088 = vpop.f32.mrf.mxu0
    %v1089 = vadd.f32 0.0, %v1088
    %1090 = vdwg.mxu0
    %v1091 = vxor.u32 %v1086, 2147483648
    %v1092 = vxor.u32 %v1089, 2147483648
    %v1093 = vmul.f32 %v1091, 1.442695
    %v1094 = vpow.pop %v1093
    %v1095 = vmul.f32 %v1092, 1.442695
    %v1096 = vpow.pop %v1095
    %v1097 = vadd.f32 %v1094, 1.0
    %v1098 = vadd.f32 %v1096, 1.0
    %v1099 = vrcp.pop %v1097
    %v1100 = vmul.f32 %v1097, %v1099
    %v1101 = vsub.f32 1.0, %v1100
    %v1102 = vmul.f32 %v1099, %v1101
    %v1103 = vadd.f32 %v1099, %v1102
    %vm1104 = vweird.f32 %v1097
    %vm1105 = vweird.f32 %v1099
    %vm1106 = vmor %vm1104, %vm1105
    %v1107 = vsel %vm1106, %v1099, %v1103
    %v1108 = vand.u32 2147483647, %v1097
    %vm1109 = vcmp.eq.f32.partialorder %v1108, 8.507059e+37
    %v1110 = vand.u32 %v1097, 2147483648
    %v1111 = vor.u32 1.1754944e-38, %v1110
    %v1112 = vsel %vm1109, %v1111, %v1107
    %v1113 = vmul.f32 1.0, %v1112
    %v1114 = vrcp.pop %v1098
    %v1115 = vmul.f32 %v1098, %v1114
    %v1116 = vsub.f32 1.0, %v1115
    %v1117 = vmul.f32 %v1114, %v1116
    %v1118 = vadd.f32 %v1114, %v1117
    %vm1119 = vweird.f32 %v1098
    %vm1120 = vweird.f32 %v1114
    %vm1121 = vmor %vm1119, %vm1120
    %v1122 = vsel %vm1121, %v1114, %v1118
    %v1123 = vand.u32 2147483647, %v1098
    %vm1124 = vcmp.eq.f32.partialorder %v1123, 8.507059e+37
    %v1125 = vand.u32 %v1098, 2147483648
    %v1126 = vor.u32 1.1754944e-38, %v1125
    %v1127 = vsel %vm1124, %v1126, %v1122
    %v1128 = vmul.f32 1.0, %v1127
    %1129 = vst.msk [vmem:[#allocation17] sm:$0xff] %vm164, %v1113
    %1130 = vst.msk [vmem:[#allocation17 + $0x8] sm:$0xff] %vm164, %v1128
    %v1131 = vld [vmem:[#allocation11] sm:$0xff]
    %1132 = vmatpush.msra.mxu0 0.0
    %1133 = vmatpush.msra.mxu0 0.0
    %1134 = vmatpush.msra.mxu0 0.0
    %1135 = vmatpush.msra.mxu0 0.0
    %1136 = vmatpush.msra.mxu0 0.0
    %1137 = vmatpush.msra.mxu0 0.0
    %1138 = vmatpush.msra.mxu0 0.0
    %1139 = vmatpush.msra.mxu0 0.0
    %1140 = vmatpush.msra.mxu0 0.0
    %1141 = vmatpush.msra.mxu0 0.0
    %1142 = vmatpush.msra.mxu0 0.0
    %1143 = vmatpush.msra.mxu0 0.0
    %1144 = vmatpush.msra.mxu0 0.0
    %1145 = vmatpush.msra.mxu0 0.0
    %1146 = vmatpush.msra.mxu0 0.0
    %1147 = vmatpush.msra.mxu0 %v1131
    %1148 = vmatmul.f32.gmra.mxu0 %v1063
    %v1149 = vpop.f32.mrf.mxu0
    %v1150 = vadd.f32 0.0, %v1149
    %1151 = vmatmul.f32.gmra.mxu0 %v1066
    %v1152 = vpop.f32.mrf.mxu0
    %v1153 = vadd.f32 0.0, %v1152
    %1154 = vdwg.mxu0
    %v1155 = vtanh.pop %v1150
    %v1156 = vtanh.pop %v1153
    %v1157 = vmul.f32 %v1155, 0.25
    %v1158 = vmul.f32 %v1156, 0.25
    %v1159 = vtanh.pop %v1155
    %v1160 = vtanh.pop %v1156
    %1163 = vrot.lane.b32.xlu0 %v1157, 64
    %v1164 = vpop.permute.xlu0 %1163
    %1165 = vrot.lane.b32.xlu0 %v1158, 64
    %v1166 = vpop.permute.xlu0 %1165
    %v1167 = vsel %vm164, %v1164, 0
    %v1169 = vsel %vm164, %v1166, 0
    %v1172 = vsel %vm164, %v1155, 0
    %v1175 = vsel %vm164, %v1156, 0
    %1177 = vmatpush.xpose.msra.mxu0 0.0
    %1178 = vmatpush.xpose.msra.mxu0 0.0
    %1179 = vmatpush.xpose.msra.mxu0 0.0
    %1180 = vmatpush.xpose.msra.mxu0 0.0
    %1181 = vmatpush.xpose.msra.mxu0 0.0
    %1182 = vmatpush.xpose.msra.mxu0 0.0
    %1183 = vmatpush.xpose.msra.mxu0 0.0
    %1184 = vmatpush.xpose.msra.mxu0 0.0
    %1185 = vmatpush.xpose.msra.mxu0 0.0
    %1186 = vmatpush.xpose.msra.mxu0 0.0
    %1187 = vmatpush.xpose.msra.mxu0 0.0
    %1188 = vmatpush.xpose.msra.mxu0 0.0
    %1189 = vmatpush.xpose.msra.mxu0 0.0
    %1190 = vmatpush.xpose.msra.mxu0 0.0
    %1191 = vmatpush.xpose.msra.mxu0 %v1175
    %1192 = vmatpush.xpose.msra.mxu0 %v1172
    %1193 = vmatmul.f32.gmra.mxu0 %v1167
    %v1194 = vpop.f32.mrf.mxu0
    %v1195 = vadd.f32 0.0, %v1194
    %1196 = vmatmul.f32.gmra.mxu0 %v1169
    %v1197 = vpop.f32.mrf.mxu0
    %v1198 = vadd.f32 0.0, %v1197
    %1199 = vdwg.mxu0
    %v1200 = vmul.f32 %v1195, 1.442695
    %v1201 = vpow.pop %v1200
    %v1202 = vmul.f32 %v1198, 1.442695
    %v1203 = vpow.pop %v1202
    %v1204 = vmul.f32 %v1201, %v158
    %v1205 = vmul.f32 %v1203, %v159
    %v1206 = vsel %vm164, %v1204, 0.0
    %1207 = vadd.xlane.f32.xlu0 %v1206
    %v1208 = vpop.xlane.xlu0 %1207
    %v1209 = vsel %vm164, %v1205, 0.0
    %1210 = vadd.xlane.f32.xlu0 %v1209
    %v1211 = vpop.xlane.xlu0 %1210
    %v1212 = vrcp.pop %v1208
    %v1213 = vmul.f32 %v1208, %v1212
    %v1214 = vsub.f32 1.0, %v1213
    %v1215 = vmul.f32 %v1212, %v1214
    %v1216 = vadd.f32 %v1212, %v1215
    %vm1217 = vweird.f32 %v1208
    %vm1218 = vweird.f32 %v1212
    %vm1219 = vmor %vm1217, %vm1218
    %v1220 = vsel %vm1219, %v1212, %v1216
    %v1221 = vand.u32 2147483647, %v1208
    %vm1222 = vcmp.eq.f32.partialorder %v1221, 8.507059e+37
    %v1223 = vand.u32 %v1208, 2147483648
    %v1224 = vor.u32 1.1754944e-38, %v1223
    %v1225 = vsel %vm1222, %v1224, %v1220
    %v1226 = vrcp.pop %v1211
    %v1227 = vmul.f32 %v1211, %v1226
    %v1228 = vsub.f32 1.0, %v1227
    %v1229 = vmul.f32 %v1226, %v1228
    %v1230 = vadd.f32 %v1226, %v1229
    %vm1231 = vweird.f32 %v1211
    %vm1232 = vweird.f32 %v1226
    %vm1233 = vmor %vm1231, %vm1232
    %v1234 = vsel %vm1233, %v1226, %v1230
    %v1235 = vand.u32 2147483647, %v1211
    %vm1236 = vcmp.eq.f32.partialorder %v1235, 8.507059e+37
    %v1237 = vand.u32 %v1211, 2147483648
    %v1238 = vor.u32 1.1754944e-38, %v1237
    %v1239 = vsel %vm1236, %v1238, %v1234
    %v1240 = vmul.f32 %v1159, %v1225
    %v1241 = vmul.f32 %v1160, %v1239
    %1242 = vrot.lane.b32.xlu0 %v1157, 48
    %v1243 = vpop.permute.xlu0 %1242
    %1244 = vrot.lane.b32.xlu0 %v1158, 48
    %v1245 = vpop.permute.xlu0 %1244
    %1246 = vrot.lane.b32.xlu0 %v1155, 112
    %v1247 = vpop.permute.xlu0 %1246
    %1248 = vrot.lane.b32.xlu0 %v1156, 112
    %v1249 = vpop.permute.xlu0 %1248
    %v1250 = vsel %vm164, %v1243, 0
    %v1252 = vsel %vm164, %v1245, 0
    %v1254 = vsel %vm164, %v1247, 0
    %v1256 = vsel %vm164, %v1249, 0
    %1258 = vmatpush.xpose.msra.mxu0 0.0
    %1259 = vmatpush.xpose.msra.mxu0 0.0
    %1260 = vmatpush.xpose.msra.mxu0 0.0
    %1261 = vmatpush.xpose.msra.mxu0 0.0
    %1262 = vmatpush.xpose.msra.mxu0 0.0
    %1263 = vmatpush.xpose.msra.mxu0 0.0
    %1264 = vmatpush.xpose.msra.mxu0 0.0
    %1265 = vmatpush.xpose.msra.mxu0 0.0
    %1266 = vmatpush.xpose.msra.mxu0 0.0
    %1267 = vmatpush.xpose.msra.mxu0 0.0
    %1268 = vmatpush.xpose.msra.mxu0 0.0
    %1269 = vmatpush.xpose.msra.mxu0 0.0
    %1270 = vmatpush.xpose.msra.mxu0 0.0
    %1271 = vmatpush.xpose.msra.mxu0 0.0
    %1272 = vmatpush.xpose.msra.mxu0 %v1256
    %1273 = vmatpush.xpose.msra.mxu0 %v1254
    %1274 = vmatmul.f32.gmra.mxu0 %v1250
    %v1275 = vpop.f32.mrf.mxu0
    %v1276 = vadd.f32 0.0, %v1275
    %1277 = vmatmul.f32.gmra.mxu0 %v1252
    %v1278 = vpop.f32.mrf.mxu0
    %v1279 = vadd.f32 0.0, %v1278
    %1280 = vdwg.mxu0
    %v1281 = vmul.f32 %v1276, 1.442695
    %v1282 = vpow.pop %v1281
    %v1283 = vmul.f32 %v1279, 1.442695
    %v1284 = vpow.pop %v1283
    %v1285 = vmul.f32 %v1282, %v158
    %v1286 = vmul.f32 %v1284, %v159
    %v1287 = vsel %vm164, %v1285, 0.0
    %1288 = vadd.xlane.f32.xlu0 %v1287
    %v1289 = vpop.xlane.xlu0 %1288
    %v1290 = vsel %vm164, %v1286, 0.0
    %1291 = vadd.xlane.f32.xlu0 %v1290
    %v1292 = vpop.xlane.xlu0 %1291
    %v1293 = vrcp.pop %v1289
    %v1294 = vmul.f32 %v1289, %v1293
    %v1295 = vsub.f32 1.0, %v1294
    %v1296 = vmul.f32 %v1293, %v1295
    %v1297 = vadd.f32 %v1293, %v1296
    %vm1298 = vweird.f32 %v1289
    %vm1299 = vweird.f32 %v1293
    %vm1300 = vmor %vm1298, %vm1299
    %v1301 = vsel %vm1300, %v1293, %v1297
    %v1302 = vand.u32 2147483647, %v1289
    %vm1303 = vcmp.eq.f32.partialorder %v1302, 8.507059e+37
    %v1304 = vand.u32 %v1289, 2147483648
    %v1305 = vor.u32 1.1754944e-38, %v1304
    %v1306 = vsel %vm1303, %v1305, %v1301
    %v1307 = vrcp.pop %v1292
    %v1308 = vmul.f32 %v1292, %v1307
    %v1309 = vsub.f32 1.0, %v1308
    %v1310 = vmul.f32 %v1307, %v1309
    %v1311 = vadd.f32 %v1307, %v1310
    %vm1312 = vweird.f32 %v1292
    %vm1313 = vweird.f32 %v1307
    %vm1314 = vmor %vm1312, %vm1313
    %v1315 = vsel %vm1314, %v1307, %v1311
    %v1316 = vand.u32 2147483647, %v1292
    %vm1317 = vcmp.eq.f32.partialorder %v1316, 8.507059e+37
    %v1318 = vand.u32 %v1292, 2147483648
    %v1319 = vor.u32 1.1754944e-38, %v1318
    %v1320 = vsel %vm1317, %v1319, %v1315
    %v1321 = vmul.f32 %v1159, %v1306
    %v1322 = vmul.f32 %v1160, %v1320
    %1325 = vrot.lane.b32.xlu0 %v1321, 112
    %v1326 = vpop.permute.xlu0 %1325
    %1327 = vrot.lane.b32.xlu0 %v1322, 112
    %v1328 = vpop.permute.xlu0 %1327
    %v1332 = vsel %vm164, %v1285, 0
    %v1335 = vsel %vm164, %v1286, 0
    %1337 = vmatpush.msra.mxu0 0.0
    %1338 = vmatpush.msra.mxu0 0.0
    %1339 = vmatpush.msra.mxu0 0.0
    %1340 = vmatpush.msra.mxu0 0.0
    %1341 = vmatpush.msra.mxu0 0.0
    %1342 = vmatpush.msra.mxu0 0.0
    %1343 = vmatpush.msra.mxu0 0.0
    %1344 = vmatpush.msra.mxu0 0.0
    %1345 = vmatpush.msra.mxu0 0.0
    %1346 = vmatpush.msra.mxu0 0.0
    %1347 = vmatpush.msra.mxu0 0.0
    %1348 = vmatpush.msra.mxu0 0.0
    %1349 = vmatpush.msra.mxu0 0.0
    %1350 = vmatpush.msra.mxu0 0.0
    %1351 = vmatpush.msra.mxu0 %v1328
    %1352 = vmatpush.msra.mxu0 %v1326
    %1353 = vmatmul.f32.gmra.mxu0 %v1332
    %v1354 = vpop.f32.mrf.mxu0
    %v1355 = vadd.f32 0.0, %v1354
    %1356 = vmatmul.f32.gmra.mxu0 %v1335
    %v1357 = vpop.f32.mrf.mxu0
    %v1358 = vadd.f32 0.0, %v1357
    %1359 = vdwg.mxu0
    %v1361 = vsel %vm164, %v1204, 0
    %v1364 = vsel %vm164, %v1205, 0
    %1366 = vmatpush.msra.mxu0 0.0
    %1367 = vmatpush.msra.mxu0 0.0
    %1368 = vmatpush.msra.mxu0 0.0
    %1369 = vmatpush.msra.mxu0 0.0
    %1370 = vmatpush.msra.mxu0 0.0
    %1371 = vmatpush.msra.mxu0 0.0
    %1372 = vmatpush.msra.mxu0 0.0
    %1373 = vmatpush.msra.mxu0 0.0
    %1374 = vmatpush.msra.mxu0 0.0
    %1375 = vmatpush.msra.mxu0 0.0
    %1376 = vmatpush.msra.mxu0 0.0
    %1377 = vmatpush.msra.mxu0 0.0
    %1378 = vmatpush.msra.mxu0 0.0
    %1379 = vmatpush.msra.mxu0 0.0
    %1380 = vmatpush.msra.mxu0 %v1241
    %1381 = vmatpush.msra.mxu0 %v1240
    %1382 = vmatmul.f32.gmra.mxu0 %v1361
    %v1383 = vpop.f32.mrf.mxu0
    %v1384 = vadd.f32 %v1355, %v1383
    %1385 = vmatmul.f32.gmra.mxu0 %v1364
    %v1386 = vpop.f32.mrf.mxu0
    %v1387 = vadd.f32 %v1358, %v1386
    %1388 = vdwg.mxu0
    %1389 = vrot.lane.b32.xlu0 %v1157, 32
    %v1390 = vpop.permute.xlu0 %1389
    %1391 = vrot.lane.b32.xlu0 %v1158, 32
    %v1392 = vpop.permute.xlu0 %1391
    %1393 = vrot.lane.b32.xlu0 %v1155, 96
    %v1394 = vpop.permute.xlu0 %1393
    %1395 = vrot.lane.b32.xlu0 %v1156, 96
    %v1396 = vpop.permute.xlu0 %1395
    %v1397 = vsel %vm164, %v1390, 0
    %v1399 = vsel %vm164, %v1392, 0
    %v1401 = vsel %vm164, %v1394, 0
    %v1403 = vsel %vm164, %v1396, 0
    %1405 = vmatpush.xpose.msra.mxu0 0.0
    %1406 = vmatpush.xpose.msra.mxu0 0.0
    %1407 = vmatpush.xpose.msra.mxu0 0.0
    %1408 = vmatpush.xpose.msra.mxu0 0.0
    %1409 = vmatpush.xpose.msra.mxu0 0.0
    %1410 = vmatpush.xpose.msra.mxu0 0.0
    %1411 = vmatpush.xpose.msra.mxu0 0.0
    %1412 = vmatpush.xpose.msra.mxu0 0.0
    %1413 = vmatpush.xpose.msra.mxu0 0.0
    %1414 = vmatpush.xpose.msra.mxu0 0.0
    %1415 = vmatpush.xpose.msra.mxu0 0.0
    %1416 = vmatpush.xpose.msra.mxu0 0.0
    %1417 = vmatpush.xpose.msra.mxu0 0.0
    %1418 = vmatpush.xpose.msra.mxu0 0.0
    %1419 = vmatpush.xpose.msra.mxu0 %v1403
    %1420 = vmatpush.xpose.msra.mxu0 %v1401
    %1421 = vmatmul.f32.gmra.mxu0 %v1397
    %v1422 = vpop.f32.mrf.mxu0
    %v1423 = vadd.f32 0.0, %v1422
    %1424 = vmatmul.f32.gmra.mxu0 %v1399
    %v1425 = vpop.f32.mrf.mxu0
    %v1426 = vadd.f32 0.0, %v1425
    %1427 = vdwg.mxu0
    %v1428 = vmul.f32 %v1423, 1.442695
    %v1429 = vpow.pop %v1428
    %v1430 = vmul.f32 %v1426, 1.442695
    %v1431 = vpow.pop %v1430
    %v1432 = vmul.f32 %v1429, %v158
    %v1433 = vmul.f32 %v1431, %v159
    %v1434 = vsel %vm164, %v1432, 0.0
    %1435 = vadd.xlane.f32.xlu0 %v1434
    %v1436 = vpop.xlane.xlu0 %1435
    %v1437 = vsel %vm164, %v1433, 0.0
    %1438 = vadd.xlane.f32.xlu0 %v1437
    %v1439 = vpop.xlane.xlu0 %1438
    %v1440 = vrcp.pop %v1436
    %v1441 = vmul.f32 %v1436, %v1440
    %v1442 = vsub.f32 1.0, %v1441
    %v1443 = vmul.f32 %v1440, %v1442
    %v1444 = vadd.f32 %v1440, %v1443
    %vm1445 = vweird.f32 %v1436
    %vm1446 = vweird.f32 %v1440
    %vm1447 = vmor %vm1445, %vm1446
    %v1448 = vsel %vm1447, %v1440, %v1444
    %v1449 = vand.u32 2147483647, %v1436
    %vm1450 = vcmp.eq.f32.partialorder %v1449, 8.507059e+37
    %v1451 = vand.u32 %v1436, 2147483648
    %v1452 = vor.u32 1.1754944e-38, %v1451
    %v1453 = vsel %vm1450, %v1452, %v1448
    %v1454 = vrcp.pop %v1439
    %v1455 = vmul.f32 %v1439, %v1454
    %v1456 = vsub.f32 1.0, %v1455
    %v1457 = vmul.f32 %v1454, %v1456
    %v1458 = vadd.f32 %v1454, %v1457
    %vm1459 = vweird.f32 %v1439
    %vm1460 = vweird.f32 %v1454
    %vm1461 = vmor %vm1459, %vm1460
    %v1462 = vsel %vm1461, %v1454, %v1458
    %v1463 = vand.u32 2147483647, %v1439
    %vm1464 = vcmp.eq.f32.partialorder %v1463, 8.507059e+37
    %v1465 = vand.u32 %v1439, 2147483648
    %v1466 = vor.u32 1.1754944e-38, %v1465
    %v1467 = vsel %vm1464, %v1466, %v1462
    %v1468 = vmul.f32 %v1159, %v1453
    %v1469 = vmul.f32 %v1160, %v1467
    %1472 = vrot.lane.b32.xlu0 %v1468, 96
    %v1473 = vpop.permute.xlu0 %1472
    %1474 = vrot.lane.b32.xlu0 %v1469, 96
    %v1475 = vpop.permute.xlu0 %1474
    %v1479 = vsel %vm164, %v1432, 0
    %v1482 = vsel %vm164, %v1433, 0
    %1484 = vmatpush.msra.mxu0 0.0
    %1485 = vmatpush.msra.mxu0 0.0
    %1486 = vmatpush.msra.mxu0 0.0
    %1487 = vmatpush.msra.mxu0 0.0
    %1488 = vmatpush.msra.mxu0 0.0
    %1489 = vmatpush.msra.mxu0 0.0
    %1490 = vmatpush.msra.mxu0 0.0
    %1491 = vmatpush.msra.mxu0 0.0
    %1492 = vmatpush.msra.mxu0 0.0
    %1493 = vmatpush.msra.mxu0 0.0
    %1494 = vmatpush.msra.mxu0 0.0
    %1495 = vmatpush.msra.mxu0 0.0
    %1496 = vmatpush.msra.mxu0 0.0
    %1497 = vmatpush.msra.mxu0 0.0
    %1498 = vmatpush.msra.mxu0 %v1475
    %1499 = vmatpush.msra.mxu0 %v1473
    %1500 = vmatmul.f32.gmra.mxu0 %v1479
    %v1501 = vpop.f32.mrf.mxu0
    %v1502 = vadd.f32 0.0, %v1501
    %1503 = vmatmul.f32.gmra.mxu0 %v1482
    %v1504 = vpop.f32.mrf.mxu0
    %v1505 = vadd.f32 0.0, %v1504
    %1506 = vdwg.mxu0
    %v1507 = vadd.f32 %v1384, %v1502
    %v1508 = vadd.f32 %v1387, %v1505
    %1509 = vrot.lane.b32.xlu0 %v1157, 16
    %v1510 = vpop.permute.xlu0 %1509
    %1511 = vrot.lane.b32.xlu0 %v1158, 16
    %v1512 = vpop.permute.xlu0 %1511
    %1513 = vrot.lane.b32.xlu0 %v1155, 80
    %v1514 = vpop.permute.xlu0 %1513
    %1515 = vrot.lane.b32.xlu0 %v1156, 80
    %v1516 = vpop.permute.xlu0 %1515
    %v1517 = vsel %vm164, %v1510, 0
    %v1519 = vsel %vm164, %v1512, 0
    %v1521 = vsel %vm164, %v1514, 0
    %v1523 = vsel %vm164, %v1516, 0
    %1525 = vmatpush.xpose.msra.mxu0 0.0
    %1526 = vmatpush.xpose.msra.mxu0 0.0
    %1527 = vmatpush.xpose.msra.mxu0 0.0
    %1528 = vmatpush.xpose.msra.mxu0 0.0
    %1529 = vmatpush.xpose.msra.mxu0 0.0
    %1530 = vmatpush.xpose.msra.mxu0 0.0
    %1531 = vmatpush.xpose.msra.mxu0 0.0
    %1532 = vmatpush.xpose.msra.mxu0 0.0
    %1533 = vmatpush.xpose.msra.mxu0 0.0
    %1534 = vmatpush.xpose.msra.mxu0 0.0
    %1535 = vmatpush.xpose.msra.mxu0 0.0
    %1536 = vmatpush.xpose.msra.mxu0 0.0
    %1537 = vmatpush.xpose.msra.mxu0 0.0
    %1538 = vmatpush.xpose.msra.mxu0 0.0
    %1539 = vmatpush.xpose.msra.mxu0 %v1523
    %1540 = vmatpush.xpose.msra.mxu0 %v1521
    %1541 = vmatmul.f32.gmra.mxu0 %v1517
    %v1542 = vpop.f32.mrf.mxu0
    %v1543 = vadd.f32 0.0, %v1542
    %1544 = vmatmul.f32.gmra.mxu0 %v1519
    %v1545 = vpop.f32.mrf.mxu0
    %v1546 = vadd.f32 0.0, %v1545
    %1547 = vdwg.mxu0
    %v1548 = vmul.f32 %v1543, 1.442695
    %v1549 = vpow.pop %v1548
    %v1550 = vmul.f32 %v1546, 1.442695
    %v1551 = vpow.pop %v1550
    %v1552 = vmul.f32 %v1549, %v158
    %v1553 = vmul.f32 %v1551, %v159
    %v1554 = vsel %vm164, %v1552, 0.0
    %1555 = vadd.xlane.f32.xlu0 %v1554
    %v1556 = vpop.xlane.xlu0 %1555
    %v1557 = vsel %vm164, %v1553, 0.0
    %1558 = vadd.xlane.f32.xlu0 %v1557
    %v1559 = vpop.xlane.xlu0 %1558
    %v1560 = vrcp.pop %v1556
    %v1561 = vmul.f32 %v1556, %v1560
    %v1562 = vsub.f32 1.0, %v1561
    %v1563 = vmul.f32 %v1560, %v1562
    %v1564 = vadd.f32 %v1560, %v1563
    %vm1565 = vweird.f32 %v1556
    %vm1566 = vweird.f32 %v1560
    %vm1567 = vmor %vm1565, %vm1566
    %v1568 = vsel %vm1567, %v1560, %v1564
    %v1569 = vand.u32 2147483647, %v1556
    %vm1570 = vcmp.eq.f32.partialorder %v1569, 8.507059e+37
    %v1571 = vand.u32 %v1556, 2147483648
    %v1572 = vor.u32 1.1754944e-38, %v1571
    %v1573 = vsel %vm1570, %v1572, %v1568
    %v1574 = vrcp.pop %v1559
    %v1575 = vmul.f32 %v1559, %v1574
    %v1576 = vsub.f32 1.0, %v1575
    %v1577 = vmul.f32 %v1574, %v1576
    %v1578 = vadd.f32 %v1574, %v1577
    %vm1579 = vweird.f32 %v1559
    %vm1580 = vweird.f32 %v1574
    %vm1581 = vmor %vm1579, %vm1580
    %v1582 = vsel %vm1581, %v1574, %v1578
    %v1583 = vand.u32 2147483647, %v1559
    %vm1584 = vcmp.eq.f32.partialorder %v1583, 8.507059e+37
    %v1585 = vand.u32 %v1559, 2147483648
    %v1586 = vor.u32 1.1754944e-38, %v1585
    %v1587 = vsel %vm1584, %v1586, %v1582
    %v1588 = vmul.f32 %v1159, %v1573
    %v1589 = vmul.f32 %v1160, %v1587
    %1592 = vrot.lane.b32.xlu0 %v1588, 80
    %v1593 = vpop.permute.xlu0 %1592
    %1594 = vrot.lane.b32.xlu0 %v1589, 80
    %v1595 = vpop.permute.xlu0 %1594
    %v1599 = vsel %vm164, %v1552, 0
    %v1602 = vsel %vm164, %v1553, 0
    %1604 = vmatpush.msra.mxu0 0.0
    %1605 = vmatpush.msra.mxu0 0.0
    %1606 = vmatpush.msra.mxu0 0.0
    %1607 = vmatpush.msra.mxu0 0.0
    %1608 = vmatpush.msra.mxu0 0.0
    %1609 = vmatpush.msra.mxu0 0.0
    %1610 = vmatpush.msra.mxu0 0.0
    %1611 = vmatpush.msra.mxu0 0.0
    %1612 = vmatpush.msra.mxu0 0.0
    %1613 = vmatpush.msra.mxu0 0.0
    %1614 = vmatpush.msra.mxu0 0.0
    %1615 = vmatpush.msra.mxu0 0.0
    %1616 = vmatpush.msra.mxu0 0.0
    %1617 = vmatpush.msra.mxu0 0.0
    %1618 = vmatpush.msra.mxu0 %v1595
    %1619 = vmatpush.msra.mxu0 %v1593
    %1620 = vmatmul.f32.gmra.mxu0 %v1599
    %v1621 = vpop.f32.mrf.mxu0
    %v1622 = vadd.f32 0.0, %v1621
    %1623 = vmatmul.f32.gmra.mxu0 %v1602
    %v1624 = vpop.f32.mrf.mxu0
    %v1625 = vadd.f32 0.0, %v1624
    %1626 = vdwg.mxu0
    %v1627 = vadd.f32 %v1507, %v1622
    %v1628 = vadd.f32 %v1508, %v1625
    %1629 = vmatpush.msra.mxu0 0.0
    %1630 = vmatpush.msra.mxu0 0.0
    %1631 = vmatpush.msra.mxu0 0.0
    %1632 = vmatpush.msra.mxu0 0.0
    %1633 = vmatpush.msra.mxu0 0.0
    %1634 = vmatpush.msra.mxu0 0.0
    %1635 = vmatpush.msra.mxu0 0.0
    %1636 = vmatpush.msra.mxu0 0.0
    %1637 = vmatpush.msra.mxu0 0.0
    %1638 = vmatpush.msra.mxu0 0.0
    %1639 = vmatpush.msra.mxu0 0.0
    %1640 = vmatpush.msra.mxu0 0.0
    %1641 = vmatpush.msra.mxu0 0.0
    %1642 = vmatpush.msra.mxu0 0.0
    %1643 = vmatpush.msra.mxu0 %v1628
    %1644 = vmatpush.msra.mxu0 %v1627
    %1645 = vmatmul.f32.gmra.mxu0 %v691
    %v1646 = vpop.f32.mrf.mxu0
    %v1647 = vadd.f32 0.0, %v1646
    %1648 = vmatmul.f32.gmra.mxu0 %v694
    %v1649 = vpop.f32.mrf.mxu0
    %v1650 = vadd.f32 0.0, %v1649
    %1651 = vdwg.mxu0
    %v1652 = vmul.f32 %v1647, 0.25
    %v1653 = vmul.f32 %v1650, 0.25
    %v1654 = vld [vmem:[#allocation13] sm:$0xff]
    %v1655 = vld [vmem:[#allocation13 + $0x8] sm:$0xff]
    %v1657 = vsel %vm164, %v1652, 0
    %v1660 = vsel %vm164, %v1653, 0
    %1662 = vmatpush.msra.mxu0 0.0
    %1663 = vmatpush.msra.mxu0 0.0
    %1664 = vmatpush.msra.mxu0 0.0
    %1665 = vmatpush.msra.mxu0 0.0
    %1666 = vmatpush.msra.mxu0 0.0
    %1667 = vmatpush.msra.mxu0 0.0
    %1668 = vmatpush.msra.mxu0 0.0
    %1669 = vmatpush.msra.mxu0 0.0
    %1670 = vmatpush.msra.mxu0 0.0
    %1671 = vmatpush.msra.mxu0 0.0
    %1672 = vmatpush.msra.mxu0 0.0
    %1673 = vmatpush.msra.mxu0 0.0
    %1674 = vmatpush.msra.mxu0 0.0
    %1675 = vmatpush.msra.mxu0 0.0
    %1676 = vmatpush.msra.mxu0 %v1655
    %1677 = vmatpush.msra.mxu0 %v1654
    %1678 = vmatmul.f32.gmra.mxu0 %v1657
    %v1679 = vpop.f32.mrf.mxu0
    %v1680 = vadd.f32 0.0, %v1679
    %1681 = vmatmul.f32.gmra.mxu0 %v1660
    %v1682 = vpop.f32.mrf.mxu0
    %v1683 = vadd.f32 0.0, %v1682
    %1684 = vdwg.mxu0
    %v1685 = vtanh.pop %v1680
    %v1686 = vtanh.pop %v1683
    %v1687 = vmul.f32 %v1685, 0.17677669
    %v1688 = vmul.f32 %v1686, 0.17677669
    %v1689 = vtanh.pop %v1685
    %v1690 = vtanh.pop %v1686
    %1693 = vrot.lane.b32.xlu0 %v1687, 96
    %v1694 = vpop.permute.xlu0 %1693
    %1695 = vrot.lane.b32.xlu0 %v1688, 96
    %v1696 = vpop.permute.xlu0 %1695
    %v1697 = vsel %vm225, %v1694, 0
    %v1699 = vsel %vm225, %v1696, 0
    %v1702 = vsel %vm225, %v1685, 0
    %v1705 = vsel %vm225, %v1686, 0
    %1707 = vmatpush.xpose.msra.mxu0 0.0
    %1708 = vmatpush.xpose.msra.mxu0 0.0
    %1709 = vmatpush.xpose.msra.mxu0 0.0
    %1710 = vmatpush.xpose.msra.mxu0 0.0
    %1711 = vmatpush.xpose.msra.mxu0 0.0
    %1712 = vmatpush.xpose.msra.mxu0 0.0
    %1713 = vmatpush.xpose.msra.mxu0 0.0
    %1714 = vmatpush.xpose.msra.mxu0 0.0
    %1715 = vmatpush.xpose.msra.mxu0 0.0
    %1716 = vmatpush.xpose.msra.mxu0 0.0
    %1717 = vmatpush.xpose.msra.mxu0 0.0
    %1718 = vmatpush.xpose.msra.mxu0 0.0
    %1719 = vmatpush.xpose.msra.mxu0 0.0
    %1720 = vmatpush.xpose.msra.mxu0 0.0
    %1721 = vmatpush.xpose.msra.mxu0 %v1705
    %1722 = vmatpush.xpose.msra.mxu0 %v1702
    %1723 = vmatmul.f32.gmra.mxu0 %v1697
    %v1724 = vpop.f32.mrf.mxu0
    %v1725 = vadd.f32 0.0, %v1724
    %1726 = vmatmul.f32.gmra.mxu0 %v1699
    %v1727 = vpop.f32.mrf.mxu0
    %v1728 = vadd.f32 0.0, %v1727
    %1729 = vdwg.mxu0
    %v1730 = vmul.f32 %v1725, 1.442695
    %v1731 = vpow.pop %v1730
    %v1732 = vmul.f32 %v1728, 1.442695
    %v1733 = vpow.pop %v1732
    %v1734 = vmul.f32 %v1731, %v158
    %v1735 = vmul.f32 %v1733, %v159
    %v1736 = vsel %vm164, %v1734, 0.0
    %1737 = vadd.xlane.f32.xlu0 %v1736
    %v1738 = vpop.xlane.xlu0 %1737
    %v1739 = vsel %vm164, %v1735, 0.0
    %1740 = vadd.xlane.f32.xlu0 %v1739
    %v1741 = vpop.xlane.xlu0 %1740
    %v1742 = vrcp.pop %v1738
    %v1743 = vmul.f32 %v1738, %v1742
    %v1744 = vsub.f32 1.0, %v1743
    %v1745 = vmul.f32 %v1742, %v1744
    %v1746 = vadd.f32 %v1742, %v1745
    %vm1747 = vweird.f32 %v1738
    %vm1748 = vweird.f32 %v1742
    %vm1749 = vmor %vm1747, %vm1748
    %v1750 = vsel %vm1749, %v1742, %v1746
    %v1751 = vand.u32 2147483647, %v1738
    %vm1752 = vcmp.eq.f32.partialorder %v1751, 8.507059e+37
    %v1753 = vand.u32 %v1738, 2147483648
    %v1754 = vor.u32 1.1754944e-38, %v1753
    %v1755 = vsel %vm1752, %v1754, %v1750
    %v1756 = vrcp.pop %v1741
    %v1757 = vmul.f32 %v1741, %v1756
    %v1758 = vsub.f32 1.0, %v1757
    %v1759 = vmul.f32 %v1756, %v1758
    %v1760 = vadd.f32 %v1756, %v1759
    %vm1761 = vweird.f32 %v1741
    %vm1762 = vweird.f32 %v1756
    %vm1763 = vmor %vm1761, %vm1762
    %v1764 = vsel %vm1763, %v1756, %v1760
    %v1765 = vand.u32 2147483647, %v1741
    %vm1766 = vcmp.eq.f32.partialorder %v1765, 8.507059e+37
    %v1767 = vand.u32 %v1741, 2147483648
    %v1768 = vor.u32 1.1754944e-38, %v1767
    %v1769 = vsel %vm1766, %v1768, %v1764
    %v1770 = vmul.f32 %v1689, %v1755
    %v1771 = vmul.f32 %v1690, %v1769
    %v1773 = vsel %vm164, %v1734, 0
    %v1776 = vsel %vm164, %v1735, 0
    %1778 = vmatpush.msra.mxu0 0.0
    %1779 = vmatpush.msra.mxu0 0.0
    %1780 = vmatpush.msra.mxu0 0.0
    %1781 = vmatpush.msra.mxu0 0.0
    %1782 = vmatpush.msra.mxu0 0.0
    %1783 = vmatpush.msra.mxu0 0.0
    %1784 = vmatpush.msra.mxu0 0.0
    %1785 = vmatpush.msra.mxu0 0.0
    %1786 = vmatpush.msra.mxu0 0.0
    %1787 = vmatpush.msra.mxu0 0.0
    %1788 = vmatpush.msra.mxu0 0.0
    %1789 = vmatpush.msra.mxu0 0.0
    %1790 = vmatpush.msra.mxu0 0.0
    %1791 = vmatpush.msra.mxu0 0.0
    %1792 = vmatpush.msra.mxu0 %v1771
    %1793 = vmatpush.msra.mxu0 %v1770
    %1794 = vmatmul.f32.gmra.mxu0 %v1773
    %v1795 = vpop.f32.mrf.mxu0
    %v1796 = vadd.f32 0.0, %v1795
    %1797 = vmatmul.f32.gmra.mxu0 %v1776
    %v1798 = vpop.f32.mrf.mxu0
    %v1799 = vadd.f32 0.0, %v1798
    %1800 = vdwg.mxu0
    %1801 = vmatpush.msra.mxu0 0.0
    %1802 = vmatpush.msra.mxu0 0.0
    %1803 = vmatpush.msra.mxu0 0.0
    %1804 = vmatpush.msra.mxu0 0.0
    %1805 = vmatpush.msra.mxu0 0.0
    %1806 = vmatpush.msra.mxu0 0.0
    %1807 = vmatpush.msra.mxu0 0.0
    %1808 = vmatpush.msra.mxu0 0.0
    %1809 = vmatpush.msra.mxu0 0.0
    %1810 = vmatpush.msra.mxu0 0.0
    %1811 = vmatpush.msra.mxu0 0.0
    %1812 = vmatpush.msra.mxu0 0.0
    %1813 = vmatpush.msra.mxu0 0.0
    %1814 = vmatpush.msra.mxu0 0.0
    %1815 = vmatpush.msra.mxu0 %v1799
    %1816 = vmatpush.msra.mxu0 %v1796
    %1817 = vmatmul.f32.gmra.mxu0 %v691
    %v1818 = vpop.f32.mrf.mxu0
    %v1819 = vadd.f32 0.0, %v1818
    %1820 = vmatmul.f32.gmra.mxu0 %v694
    %v1821 = vpop.f32.mrf.mxu0
    %v1822 = vadd.f32 0.0, %v1821
    %1823 = vdwg.mxu0
    %v1824 = vld [vmem:[#allocation14] sm:$0xff]
    %v1825 = vld [vmem:[#allocation14 + $0x8] sm:$0xff]
    %v1826 = vld [vmem:[#allocation14 + $0x10] sm:$0xff]
    %v1827 = vld [vmem:[#allocation14 + $0x18] sm:$0xff]
    %v1829 = vsel %vm225, %v1819, 0
    %v1832 = vsel %vm225, %v1822, 0
    %1834 = vmatpush.msra.mxu0 0.0
    %1835 = vmatpush.msra.mxu0 0.0
    %1836 = vmatpush.msra.mxu0 0.0
    %1837 = vmatpush.msra.mxu0 0.0
    %1838 = vmatpush.msra.mxu0 0.0
    %1839 = vmatpush.msra.mxu0 0.0
    %1840 = vmatpush.msra.mxu0 0.0
    %1841 = vmatpush.msra.mxu0 0.0
    %1842 = vmatpush.msra.mxu0 0.0
    %1843 = vmatpush.msra.mxu0 0.0
    %1844 = vmatpush.msra.mxu0 0.0
    %1845 = vmatpush.msra.mxu0 0.0
    %1846 = vmatpush.msra.mxu0 %v1827
    %1847 = vmatpush.msra.mxu0 %v1826
    %1848 = vmatpush.msra.mxu0 %v1825
    %1849 = vmatpush.msra.mxu0 %v1824
    %1850 = vmatmul.f32.gmra.mxu0 %v1829
    %v1851 = vpop.f32.mrf.mxu0
    %v1852 = vadd.f32 0.0, %v1851
    %1853 = vmatmul.f32.gmra.mxu0 %v1832
    %v1854 = vpop.f32.mrf.mxu0
    %v1855 = vadd.f32 0.0, %v1854
    %1856 = vdwg.mxu0
    %v1857 = vtanh.pop %v1852
    %v1858 = vtanh.pop %v1855
    %v1859 = vmul.f32 %v1857, 0.25
    %v1860 = vmul.f32 %v1858, 0.25
    %v1861 = vtanh.pop %v1857
    %v1862 = vtanh.pop %v1858
    %1865 = vrot.lane.b32.xlu0 %v1859, 112
    %v1866 = vpop.permute.xlu0 %1865
    %1867 = vrot.lane.b32.xlu0 %v1860, 112
    %v1868 = vpop.permute.xlu0 %1867
    %v1869 = vsel %vm164, %v1866, 0
    %v1871 = vsel %vm164, %v1868, 0
    %v1874 = vsel %vm164, %v1857, 0
    %v1877 = vsel %vm164, %v1858, 0
    %1879 = vmatpush.xpose.msra.mxu0 0.0
    %1880 = vmatpush.xpose.msra.mxu0 0.0
    %1881 = vmatpush.xpose.msra.mxu0 0.0
    %1882 = vmatpush.xpose.msra.mxu0 0.0
    %1883 = vmatpush.xpose.msra.mxu0 0.0
    %1884 = vmatpush.xpose.msra.mxu0 0.0
    %1885 = vmatpush.xpose.msra.mxu0 0.0
    %1886 = vmatpush.xpose.msra.mxu0 0.0
    %1887 = vmatpush.xpose.msra.mxu0 0.0
    %1888 = vmatpush.xpose.msra.mxu0 0.0
    %1889 = vmatpush.xpose.msra.mxu0 0.0
    %1890 = vmatpush.xpose.msra.mxu0 0.0
    %1891 = vmatpush.xpose.msra.mxu0 0.0
    %1892 = vmatpush.xpose.msra.mxu0 0.0
    %1893 = vmatpush.xpose.msra.mxu0 %v1877
    %1894 = vmatpush.xpose.msra.mxu0 %v1874
    %1895 = vmatmul.f32.gmra.mxu0 %v1869
    %v1896 = vpop.f32.mrf.mxu0
    %v1897 = vadd.f32 0.0, %v1896
    %1898 = vmatmul.f32.gmra.mxu0 %v1871
    %v1899 = vpop.f32.mrf.mxu0
    %v1900 = vadd.f32 0.0, %v1899
    %1901 = vdwg.mxu0
    %v1902 = vmul.f32 %v1897, 1.442695
    %v1903 = vpow.pop %v1902
    %v1904 = vmul.f32 %v1900, 1.442695
    %v1905 = vpow.pop %v1904
    %v1906 = vmul.f32 %v1903, %v158
    %v1907 = vmul.f32 %v1905, %v159
    %v1908 = vsel %vm164, %v1906, 0.0
    %1909 = vadd.xlane.f32.xlu0 %v1908
    %v1910 = vpop.xlane.xlu0 %1909
    %v1911 = vsel %vm164, %v1907, 0.0
    %1912 = vadd.xlane.f32.xlu0 %v1911
    %v1913 = vpop.xlane.xlu0 %1912
    %v1914 = vrcp.pop %v1910
    %v1915 = vmul.f32 %v1910, %v1914
    %v1916 = vsub.f32 1.0, %v1915
    %v1917 = vmul.f32 %v1914, %v1916
    %v1918 = vadd.f32 %v1914, %v1917
    %vm1919 = vweird.f32 %v1910
    %vm1920 = vweird.f32 %v1914
    %vm1921 = vmor %vm1919, %vm1920
    %v1922 = vsel %vm1921, %v1914, %v1918
    %v1923 = vand.u32 2147483647, %v1910
    %vm1924 = vcmp.eq.f32.partialorder %v1923, 8.507059e+37
    %v1925 = vand.u32 %v1910, 2147483648
    %v1926 = vor.u32 1.1754944e-38, %v1925
    %v1927 = vsel %vm1924, %v1926, %v1922
    %v1928 = vrcp.pop %v1913
    %v1929 = vmul.f32 %v1913, %v1928
    %v1930 = vsub.f32 1.0, %v1929
    %v1931 = vmul.f32 %v1928, %v1930
    %v1932 = vadd.f32 %v1928, %v1931
    %vm1933 = vweird.f32 %v1913
    %vm1934 = vweird.f32 %v1928
    %vm1935 = vmor %vm1933, %vm1934
    %v1936 = vsel %vm1935, %v1928, %v1932
    %v1937 = vand.u32 2147483647, %v1913
    %vm1938 = vcmp.eq.f32.partialorder %v1937, 8.507059e+37
    %v1939 = vand.u32 %v1913, 2147483648
    %v1940 = vor.u32 1.1754944e-38, %v1939
    %v1941 = vsel %vm1938, %v1940, %v1936
    %v1942 = vmul.f32 %v1861, %v1927
    %v1943 = vmul.f32 %v1862, %v1941
    %v1945 = vsel %vm164, %v1906, 0
    %v1948 = vsel %vm164, %v1907, 0
    %1950 = vmatpush.msra.mxu0 0.0
    %1951 = vmatpush.msra.mxu0 0.0
    %1952 = vmatpush.msra.mxu0 0.0
    %1953 = vmatpush.msra.mxu0 0.0
    %1954 = vmatpush.msra.mxu0 0.0
    %1955 = vmatpush.msra.mxu0 0.0
    %1956 = vmatpush.msra.mxu0 0.0
    %1957 = vmatpush.msra.mxu0 0.0
    %1958 = vmatpush.msra.mxu0 0.0
    %1959 = vmatpush.msra.mxu0 0.0
    %1960 = vmatpush.msra.mxu0 0.0
    %1961 = vmatpush.msra.mxu0 0.0
    %1962 = vmatpush.msra.mxu0 0.0
    %1963 = vmatpush.msra.mxu0 0.0
    %1964 = vmatpush.msra.mxu0 %v1943
    %1965 = vmatpush.msra.mxu0 %v1942
    %1966 = vmatmul.f32.gmra.mxu0 %v1945
    %v1967 = vpop.f32.mrf.mxu0
    %v1968 = vadd.f32 0.0, %v1967
    %1969 = vmatmul.f32.gmra.mxu0 %v1948
    %v1970 = vpop.f32.mrf.mxu0
    %v1971 = vadd.f32 0.0, %v1970
    %1972 = vdwg.mxu0
    %1973 = vmatpush.msra.mxu0 0.0
    %1974 = vmatpush.msra.mxu0 0.0
    %1975 = vmatpush.msra.mxu0 0.0
    %1976 = vmatpush.msra.mxu0 0.0
    %1977 = vmatpush.msra.mxu0 0.0
    %1978 = vmatpush.msra.mxu0 0.0
    %1979 = vmatpush.msra.mxu0 0.0
    %1980 = vmatpush.msra.mxu0 0.0
    %1981 = vmatpush.msra.mxu0 0.0
    %1982 = vmatpush.msra.mxu0 0.0
    %1983 = vmatpush.msra.mxu0 0.0
    %1984 = vmatpush.msra.mxu0 0.0
    %1985 = vmatpush.msra.mxu0 0.0
    %1986 = vmatpush.msra.mxu0 0.0
    %1987 = vmatpush.msra.mxu0 %v1971
    %1988 = vmatpush.msra.mxu0 %v1968
    %1989 = vmatmul.f32.gmra.mxu0 %v691
    %v1990 = vpop.f32.mrf.mxu0
    %v1991 = vadd.f32 0.0, %v1990
    %1992 = vmatmul.f32.gmra.mxu0 %v694
    %v1993 = vpop.f32.mrf.mxu0
    %v1994 = vadd.f32 0.0, %v1993
    %1995 = vdwg.mxu0
    %v1996 = vld [vmem:[#allocation17] sm:$0xff]
    %v1997 = vld [vmem:[#allocation17 + $0x8] sm:$0xff]
    %v1999 = vsel %vm164, %v1991, 0
    %v2002 = vsel %vm164, %v1994, 0
    %2004 = vmatpush.xpose.msra.mxu0 0.0
    %2005 = vmatpush.xpose.msra.mxu0 0.0
    %2006 = vmatpush.xpose.msra.mxu0 0.0
    %2007 = vmatpush.xpose.msra.mxu0 0.0
    %2008 = vmatpush.xpose.msra.mxu0 0.0
    %2009 = vmatpush.xpose.msra.mxu0 0.0
    %2010 = vmatpush.xpose.msra.mxu0 0.0
    %2011 = vmatpush.xpose.msra.mxu0 0.0
    %2012 = vmatpush.xpose.msra.mxu0 0.0
    %2013 = vmatpush.xpose.msra.mxu0 0.0
    %2014 = vmatpush.xpose.msra.mxu0 0.0
    %2015 = vmatpush.xpose.msra.mxu0 0.0
    %2016 = vmatpush.xpose.msra.mxu0 0.0
    %2017 = vmatpush.xpose.msra.mxu0 0.0
    %2018 = vmatpush.xpose.msra.mxu0 %v2002
    %2019 = vmatpush.xpose.msra.mxu0 %v1999
    %2020 = vmatmul.f32.gmra.mxu0 %v1999
    %v2021 = vpop.f32.mrf.mxu0
    %v2022 = vadd.f32 0.0, %v2021
    %2023 = vmatmul.f32.gmra.mxu0 %v2002
    %v2024 = vpop.f32.mrf.mxu0
    %v2025 = vadd.f32 0.0, %v2024
    %2026 = vdwg.mxu0
    %v2027 = vxor.u32 %v2022, 2147483648
    %v2028 = vxor.u32 %v2025, 2147483648
    %v2029 = vmul.f32 %v2027, 1.442695
    %v2030 = vpow.pop %v2029
    %v2031 = vmul.f32 %v2028, 1.442695
    %v2032 = vpow.pop %v2031
    %v2033 = vadd.f32 %v2030, 1.0
    %v2034 = vadd.f32 %v2032, 1.0
    %v2035 = vrcp.pop %v2033
    %v2036 = vmul.f32 %v2033, %v2035
    %v2037 = vsub.f32 1.0, %v2036
    %v2038 = vmul.f32 %v2035, %v2037
    %v2039 = vadd.f32 %v2035, %v2038
    %vm2040 = vweird.f32 %v2033
    %vm2041 = vweird.f32 %v2035
    %vm2042 = vmor %vm2040, %vm2041
    %v2043 = vsel %vm2042, %v2035, %v2039
    %v2044 = vand.u32 2147483647, %v2033
    %vm2045 = vcmp.eq.f32.partialorder %v2044, 8.507059e+37
    %v2046 = vand.u32 %v2033, 2147483648
    %v2047 = vor.u32 1.1754944e-38, %v2046
    %v2048 = vsel %vm2045, %v2047, %v2043
    %v2049 = vmul.f32 1.0, %v2048
    %v2050 = vrcp.pop %v2034
    %v2051 = vmul.f32 %v2034, %v2050
    %v2052 = vsub.f32 1.0, %v2051
    %v2053 = vmul.f32 %v2050, %v2052
    %v2054 = vadd.f32 %v2050, %v2053
    %vm2055 = vweird.f32 %v2034
    %vm2056 = vweird.f32 %v2050
    %vm2057 = vmor %vm2055, %vm2056
    %v2058 = vsel %vm2057, %v2050, %v2054
    %v2059 = vand.u32 2147483647, %v2034
    %vm2060 = vcmp.eq.f32.partialorder %v2059, 8.507059e+37
    %v2061 = vand.u32 %v2034, 2147483648
    %v2062 = vor.u32 1.1754944e-38, %v2061
    %v2063 = vsel %vm2060, %v2062, %v2058
    %v2064 = vmul.f32 1.0, %v2063
    %v2065 = vadd.f32 %v1996, %v2049
    %v2066 = vadd.f32 %v1997, %v2064
    %2067 = vst.msk [vmem:[#allocation17] sm:$0xff] %vm164, %v2065
    %2068 = vst.msk [vmem:[#allocation17 + $0x8] sm:$0xff] %vm164, %v2066
    %2069 = vrot.lane.b32.xlu0 %v1991, 8
    %v2070 = vpop.permute.xlu0 %2069
    %2071 = vrot.lane.b32.xlu0 %v1994, 8
    %v2072 = vpop.permute.xlu0 %2071
    %v2075 = vsel %vm934, %v1057, %v2070
    %v2076 = vsel %vm934, %v1060, %v2072
    %vm2077 = vcmask 195584
    %v2078 = vsel %vm2077, %v2075, 0.0
    %v2079 = vsel %vm2077, %v2076, 0.0
    %2080 = vst [vmem:[#allocation16] sm:$0xff] %v2078
    %2081 = vst [vmem:[#allocation16 + $0x8] sm:$0xff] %v2079
    // Predicated region
    $region66: #{tpu_custom_call.1} parent=1 // pred_check
      _
    $region67: #{tpu_custom_call.1} parent=1 // pred_check_branch
      %2083 = sbr.rel (0) target = $region69
    $region68: #{tpu_custom_call.1} parent=1 // pred_region
      %2085 = vsyncadd [#allocation4], 0
      %s2086 = sshll.u32 [#allocation16], 4
      %s2087 = int_to_ptr.vmem [resolvable:$true] %s2086
      %s2088 = sshll.u32 %s8, 4
      %s2089 = int_to_ptr.hbm [resolvable:$true] %s2088
      %2094 = dma.vmem_to_hbm [thread:$0]  %s2087, 256, %s2089, [#allocation4], 128, 128, 8
    $region69: #{tpu_custom_call.1} parent=1 // pred_fallthru
      _
    // Predicated region
    $region70: #{tpu_custom_call.1} parent=1 // pred_check
      _
    $region71: #{tpu_custom_call.1} parent=1 // pred_check_branch
      %2096 = sbr.rel (0) target = $region73
    $region72: #{tpu_custom_call.1} parent=1 // pred_region
      %2098 = vsyncadd [#allocation18], 0
      %s2099 = sshll.u32 [#allocation17], 4
      %s2100 = int_to_ptr.vmem [resolvable:$true] %s2099
      %s2101 = sshll.u32 %s9, 4
      %s2102 = int_to_ptr.hbm [resolvable:$true] %s2101
      %2107 = dma.vmem_to_hbm [thread:$0]  %s2100, 256, %s2102, [#allocation18], 128, 128, 8
    $region73: #{tpu_custom_call.1} parent=1 // pred_fallthru
      _
    // Predicated region
    $region74: #{tpu_custom_call.1} parent=1 // pred_check
      _
    $region75: #{tpu_custom_call.1} parent=1 // pred_check_branch
      %2109 = sbr.rel (0) target = $region77
    $region76: #{tpu_custom_call.1} parent=1 // pred_region
      %2111 = dma.done [#allocation4], 256
    $region77: #{tpu_custom_call.1} parent=1 // pred_fallthru
      _
    // Predicated region
    $region78: #{tpu_custom_call.1} parent=1 // pred_check
      _
    $region79: #{tpu_custom_call.1} parent=1 // pred_check_branch
      %2113 = sbr.rel (0) target = $region81
    $region80: #{tpu_custom_call.1} parent=1 // pred_region
      %2115 = dma.done [#allocation18], 256
    $region81: #{tpu_custom_call.1} parent=1 // pred_fallthru
      _
    %2116 = vsyncpa [#allocation3], 1
    %2117 = vsyncpa [#allocation6], 1
    %2118 = vsyncpa [#allocation9], 1
    %2119 = vsyncpa [#allocation12], 1
    %2120 = vsyncpa [#allocation15], 1
    %2121 = vsyncpa [#allocation4], 1
    %2122 = vsyncpa [#allocation18], 1

</llo_original>
